<compile_context>
chip_gen: v5e
topology: v5e:2x2
jax: 0.10.0
libtpu: 0.0.40
codegen_flags: <defaults>
</compile_context>

<pallas_src>
import math

import jax
import jax.numpy as jnp
from jax.experimental import pallas as pl
from jax.experimental.pallas import tpu as pltpu

# ----------------------------- model config (small test sizes) ---------------
EMBED_DIM = 32
N_HEADS = 4
HEAD_DIM = EMBED_DIM // N_HEADS
N_LAYERS = 2
FF_DIM = EMBED_DIM * 4
REWARD_BINS = 15
MAX_LEN = 16
LN_EPS = 1e-5

ROWS_PER_LAYER = 10                      # bq,bk,bv,bo,ln1g,ln1b,b1,b2,ln2g,ln2b
HFP_ROW = N_LAYERS * ROWS_PER_LAYER      # last row of the vector slab
VEC_ROWS = HFP_ROW + 1
W_SLAB_WIDTH = 4 * EMBED_DIM + FF_DIM    # [Wq|Wk|Wv|Wo|W1]


# ----------------------------- in-kernel math helpers ------------------------
def _erf(x):
    # Abramowitz & Stegun 7.1.26 polynomial erf (max abs err ~1.5e-7) so the
    # exact-erf GELU of PyTorch (activation='gelu') is reproduced with only
    # Mosaic-friendly elementwise ops; the 1/(1+p|x|) uses the EUP reciprocal.
    a1, a2, a3, a4, a5 = 0.254829592, -0.284496736, 1.421413741, -1.453152027, 1.061405429
    p = 0.3275911
    ax = jnp.abs(x)
    t = pl.reciprocal(1.0 + p * ax, approx=True)
    poly = ((((a5 * t + a4) * t + a3) * t + a2) * t + a1) * t
    y = 1.0 - poly * jnp.exp(-ax * ax)
    return jnp.where(x >= 0, y, -y)


def _gelu(x):
    return 0.5 * x * (1.0 + _erf(x * 0.7071067811865476))


def _layer_norm(x, gamma, beta):
    mean = jnp.mean(x, axis=-1, keepdims=True)
    var = jnp.mean((x - mean) ** 2, axis=-1, keepdims=True)
    return (x - mean) * jax.lax.rsqrt(var + LN_EPS) * gamma + beta


def _encoder_layer(x, wq, bq, wk, bk, wv, bv, wo, bo,
                   ln1g, ln1b, w1, b1, w2, b2, ln2g, ln2b):
    """Post-LN nn.TransformerEncoderLayer (GELU FFN) on one batch element (S, D)."""
    S, D = x.shape
    # Three lane-aligned dots instead of one (D, 3D) dot + lane slicing.
    q = jnp.dot(x, wq, preferred_element_type=jnp.float32) + bq
    k = jnp.dot(x, wk, preferred_element_type=jnp.float32) + bk
    v = jnp.dot(x, wv, preferred_element_type=jnp.float32) + bv

    # Per-head attention: static loop of tiny 2-D dots (guaranteed Mosaic
    # lowering, no 3-D batched dot / transposes, no giant mask, linear in B*H).
    scale = 1.0 / math.sqrt(HEAD_DIM)
    heads = []
    for h in range(N_HEADS):
        lo, hi = h * HEAD_DIM, (h + 1) * HEAD_DIM
        qh, kh, vh = q[:, lo:hi], k[:, lo:hi], v[:, lo:hi]
        s = jax.lax.dot_general(qh, kh, (((1,), (1,)), ((), ())),
                                preferred_element_type=jnp.float32) * scale
        s = s - jnp.max(s, axis=-1, keepdims=True)
        p = jnp.exp(s)
        # No mask -> the row max contributes exp(0)=1, so the denom is >= 1.
        p = p * pl.reciprocal(jnp.sum(p, axis=-1, keepdims=True), approx=True)
        heads.append(jnp.dot(p, vh, preferred_element_type=jnp.float32))
    attn = jnp.concatenate(heads, axis=-1)                                   # (S, D)
    attn = jnp.dot(attn, wo, preferred_element_type=jnp.float32) + bo

    x = _layer_norm(x + attn, ln1g, ln1b)

    h1 = _gelu(jnp.dot(x, w1, preferred_element_type=jnp.float32) + b1)
    ff = jnp.dot(h1, w2, preferred_element_type=jnp.float32) + b2

    return _layer_norm(x + ff, ln2g, ln2b)


# ----------------------------- fused forward kernel --------------------------
def fused_forward_kernel(x_ref, pe_ref, w_ref, w2_ref, vec_ref, seq_ref, hfp_ref):
    S, D = x_ref.shape
    x = x_ref[...] + pe_ref[...]                                             # PE add

    for l in range(N_LAYERS):                                                # static unroll
        base = l * ROWS_PER_LAYER
        # Static Ref slices (views) — no relayout of matmul results.
        wq = w_ref[l, :, 0 * D:1 * D]
        wk = w_ref[l, :, 1 * D:2 * D]
        wv = w_ref[l, :, 2 * D:3 * D]
        wo = w_ref[l, :, 3 * D:4 * D]
        w1 = w_ref[l, :, 4 * D:4 * D + FF_DIM]
        w2 = w2_ref[l]
        bq = vec_ref[base + 0:base + 1, :D]
        bk = vec_ref[base + 1:base + 2, :D]
        bv = vec_ref[base + 2:base + 3, :D]
        bo = vec_ref[base + 3:base + 4, :D]
        ln1g = vec_ref[base + 4:base + 5, :D]
        ln1b = vec_ref[base + 5:base + 6, :D]
        b1 = vec_ref[base + 6:base + 7, :]
        b2 = vec_ref[base + 7:base + 8, :D]
        ln2g = vec_ref[base + 8:base + 9, :D]
        ln2b = vec_ref[base + 9:base + 10, :D]
        x = _encoder_layer(x, wq, bq, wk, bk, wv, bv, wo, bo,
                           ln1g, ln1b, w1, b1, w2, b2, ln2g, ln2b)

    seq_ref[...] = x.astype(seq_ref.dtype)

    # Human-feedback head on the CLS (last) token: pure VPU lane reduction
    # (no N=1 MXU dot).  hfp_b lives at lane D of the hfp slab row, so its
    # contribution is recovered by a second lane reduction — no scalar extract.
    cls = x[S - 1:S, :]                                                      # (1, D)
    hw = vec_ref[HFP_ROW:HFP_ROW + 1, :D]                                    # (1, D)
    hb = vec_ref[HFP_ROW:HFP_ROW + 1, D:2 * D]                               # (1, D)
    logit = (jnp.sum(cls * hw, axis=-1, keepdims=True)
             + jnp.sum(hb, axis=-1, keepdims=True))                          # (1, 1)
    prob = pl.reciprocal(1.0 + jnp.exp(-logit), approx=True)                 # sigmoid
    # Lane-dense 128-wide store; wrapper takes [:, 0, 0].
    hfp_ref[...] = jnp.broadcast_to(prob, (1, 128)).astype(hfp_ref.dtype)


def fused_forward(x_seq, pe, w_slab, w2_slab, vec_slab):
    B, S, D = x_seq.shape
    return pl.pallas_call(
        fused_forward_kernel,
        grid=(B,),
        in_specs=[
            pl.BlockSpec((None, S, D), lambda b: (b, 0, 0)),                 # per-batch block
            pl.BlockSpec(pe.shape, lambda b: (0, 0)),                        # grid-invariant
            pl.BlockSpec(w_slab.shape, lambda b: (0, 0, 0)),
            pl.BlockSpec(w2_slab.shape, lambda b: (0, 0, 0)),
            pl.BlockSpec(vec_slab.shape, lambda b: (0, 0)),
        ],
        out_specs=(
            pl.BlockSpec((None, S, D), lambda b: (b, 0, 0)),
            pl.BlockSpec((None, 1, 128), lambda b: (b, 0, 0)),
        ),
        out_shape=(jax.ShapeDtypeStruct((B, S, D), jnp.float32),
                   jax.ShapeDtypeStruct((B, 1, 128), jnp.float32)),
        compiler_params=pltpu.CompilerParams(
            dimension_semantics=("parallel",),
            vmem_limit_bytes=32 * 1024 * 1024),
    )(x_seq, pe, w_slab, w2_slab, vec_slab)


# ----------------------------- parameter init (deterministic) ----------------
def init_params(key):
    D, F, L = EMBED_DIM, FF_DIM, N_LAYERS
    keys = jax.random.split(key, 3 + L)

    def pad128(v):
        return jnp.pad(v, (0, F - v.shape[0]))

    w_rows, w2_rows, vec_rows = [], [], []
    zeros_d = jnp.zeros((D,), jnp.float32)
    ones_d = jnp.ones((D,), jnp.float32)
    for l in range(L):
        lk = jax.random.split(keys[3 + l], 6)
        wq = 0.02 * jax.random.normal(lk[0], (D, D), jnp.float32)
        wk = 0.02 * jax.random.normal(lk[1], (D, D), jnp.float32)
        wv = 0.02 * jax.random.normal(lk[2], (D, D), jnp.float32)
        wo = 0.02 * jax.random.normal(lk[3], (D, D), jnp.float32)
        w1 = 0.02 * jax.random.normal(lk[4], (D, F), jnp.float32)
        w2 = 0.02 * jax.random.normal(lk[5], (F, D), jnp.float32)
        w_rows.append(jnp.concatenate([wq, wk, wv, wo, w1], axis=1))         # (D, 4D+F)
        w2_rows.append(w2)                                                   # (F, D)
        layer_vecs = [zeros_d, zeros_d, zeros_d, zeros_d,                    # bq bk bv bo
                      ones_d, zeros_d,                                       # ln1 g/b
                      jnp.zeros((F,), jnp.float32),                          # b1
                      zeros_d, ones_d, zeros_d]                              # b2, ln2 g/b
        vec_rows.extend(pad128(v) for v in layer_vecs)

    hfp_w = 0.02 * jax.random.normal(keys[2], (D,), jnp.float32)
    hfp_b = jnp.zeros((), jnp.float32)
    hfp_row = jnp.zeros((F,), jnp.float32).at[:D].set(hfp_w).at[D].set(hfp_b)
    vec_rows.append(hfp_row)

    return {
        'cls_token': 0.02 * jax.random.normal(keys[0], (1, 1, D), jnp.float32),
        'reward_embed': 0.02 * jax.random.normal(keys[1], (REWARD_BINS, D), jnp.float32),
        'w_slab': jnp.stack(w_rows),       # (L, D, 4D+F)
        'w2_slab': jnp.stack(w2_rows),     # (L, F, D)
        'vec_slab': jnp.stack(vec_rows),   # (10L+1, 128)
    }


def sinusoidal_pe(max_len, d_model):
    position = jnp.arange(max_len, dtype=jnp.float32)[:, None]
    div_term = jnp.exp(jnp.arange(0, d_model, 2, dtype=jnp.float32)
                       * (-math.log(10000.0) / d_model))
    pe = jnp.zeros((max_len, d_model), dtype=jnp.float32)
    pe = pe.at[:, 0::2].set(jnp.sin(position * div_term))
    pe = pe.at[:, 1::2].set(jnp.cos(position * div_term))
    return pe


# ----------------------------- forward pass ----------------------------------
def forward(params, pe_table, obs_act_tokens, reward_prev):
    B, T, D = obs_act_tokens.shape
    S = T + 2
    # TODO(synk): RewardTokenEmbedding definition not provided; assumed uniform
    # bucketization of reward_prev in [-1, 1] into REWARD_BINS + embedding lookup.
    r = jnp.clip(reward_prev, -1.0, 1.0)
    idx = jnp.clip(jnp.floor((r + 1.0) * 0.5 * REWARD_BINS).astype(jnp.int32),
                   0, REWARD_BINS - 1)
    r_emb = params['reward_embed'][idx][:, None, :]                          # (B, 1, D)
    cls = jnp.broadcast_to(params['cls_token'], (B, 1, D))
    x = jnp.concatenate([obs_act_tokens, r_emb, cls], axis=1)                # (B, S, D)

    pe = pe_table[:S]
    # TODO(synk): key_padding_mask not supported in this kernel (None path only).
    seq_out, hfp_out = fused_forward(x, pe, params['w_slab'],
                                     params['w2_slab'], params['vec_slab'])

    cls_hidden = seq_out[:, -1]                                              # (B, D)
    hfp_prob = hfp_out[:, 0, 0]                                              # (B,)
    return {'sequence_output': seq_out, 'cls_hidden': cls_hidden, 'hfp_prob': hfp_prob}


forward_jit = jax.jit(forward)


# ----------------------------- main -------------------------------------------
if __name__ == "__main__":
    key = jax.random.PRNGKey(0)
    k_params, k_obs, k_rew = jax.random.split(key, 3)

    params = init_params(k_params)
    pe_table = sinusoidal_pe(MAX_LEN + 1, EMBED_DIM)

    B, T = 2, 8                                                              # 8 obs/act tokens
    obs_act_tokens = jax.random.normal(k_obs, (B, T, EMBED_DIM), jnp.float32)
    reward_prev = jax.random.uniform(k_rew, (B,), jnp.float32, -1.0, 1.0)

    out = forward_jit(params, pe_table, obs_act_tokens, reward_prev)
    out = jax.block_until_ready(out)

    assert out['sequence_output'].shape == (B, T + 2, EMBED_DIM)
    assert out['cls_hidden'].shape == (B, EMBED_DIM)
    assert out['hfp_prob'].shape == (B,)
    assert bool(jnp.all(jnp.isfinite(out['sequence_output'])))
    assert bool(jnp.all((out['hfp_prob'] >= 0.0) & (out['hfp_prob'] <= 1.0)))

    print("KERNEL_OK")
</pallas_src>

<mosaic_0001>
module attributes {stable_mosaic.version = 11 : i64} {
  func.func @fused_forward_kernel(%arg0: i32, %arg1: memref<1x10x32xf32, #tpu.memory_space<vmem>>, %arg2: memref<10x32xf32, #tpu.memory_space<vmem>>, %arg3: memref<2x32x256xf32, #tpu.memory_space<vmem>>, %arg4: memref<2x128x32xf32, #tpu.memory_space<vmem>>, %arg5: memref<21x128xf32, #tpu.memory_space<vmem>>, %arg6: memref<1x10x32xf32, #tpu.memory_space<vmem>>, %arg7: memref<1x1x128xf32, #tpu.memory_space<vmem>>) attributes {dimension_semantics = [#tpu.dimension_semantics<parallel>], iteration_bounds = array<i64: 2>, scalar_prefetch = 0 : i64, scratch_operands = 0 : i64, tpu.core_type = #tpu.core_type<tc>, window_params = [{transform_indices = @transform_0, window_bounds = array<i64: 1, 10, 32>}, {pipeline_mode = #tpu.pipeline_mode<synchronous>, transform_indices = @transform_1, window_bounds = array<i64: 10, 32>}, {pipeline_mode = #tpu.pipeline_mode<synchronous>, transform_indices = @transform_2, window_bounds = array<i64: 2, 32, 256>}, {pipeline_mode = #tpu.pipeline_mode<synchronous>, transform_indices = @transform_3, window_bounds = array<i64: 2, 128, 32>}, {pipeline_mode = #tpu.pipeline_mode<synchronous>, transform_indices = @transform_4, window_bounds = array<i64: 21, 128>}, {transform_indices = @transform_5, window_bounds = array<i64: 1, 10, 32>}, {transform_indices = @transform_6, window_bounds = array<i64: 1, 1, 128>}]} {
    %c0 = arith.constant 0 : index
    %c0_0 = arith.constant 0 : index
    %c0_1 = arith.constant 0 : index
    %0 = vector.load %arg1[%c0, %c0_0, %c0_1] : memref<1x10x32xf32, #tpu.memory_space<vmem>>, vector<1x10x32xf32>
    %1 = vector.shape_cast %0 : vector<1x10x32xf32> to vector<10x32xf32>
    %c0_2 = arith.constant 0 : index
    %c0_3 = arith.constant 0 : index
    %2 = vector.load %arg2[%c0_2, %c0_3] : memref<10x32xf32, #tpu.memory_space<vmem>>, vector<10x32xf32>
    %3 = arith.addf %1, %2 : vector<10x32xf32>
    %c0_4 = arith.constant 0 : index
    %c0_5 = arith.constant 0 : index
    %c0_6 = arith.constant 0 : index
    %4 = vector.load %arg3[%c0_4, %c0_5, %c0_6] : memref<2x32x256xf32, #tpu.memory_space<vmem>>, vector<1x32x32xf32>
    %5 = vector.shape_cast %4 : vector<1x32x32xf32> to vector<32x32xf32>
    %c0_7 = arith.constant 0 : index
    %c0_8 = arith.constant 0 : index
    %c32 = arith.constant 32 : index
    %6 = vector.load %arg3[%c0_7, %c0_8, %c32] : memref<2x32x256xf32, #tpu.memory_space<vmem>>, vector<1x32x32xf32>
    %7 = vector.shape_cast %6 : vector<1x32x32xf32> to vector<32x32xf32>
    %c0_9 = arith.constant 0 : index
    %c0_10 = arith.constant 0 : index
    %c64 = arith.constant 64 : index
    %8 = vector.load %arg3[%c0_9, %c0_10, %c64] : memref<2x32x256xf32, #tpu.memory_space<vmem>>, vector<1x32x32xf32>
    %9 = vector.shape_cast %8 : vector<1x32x32xf32> to vector<32x32xf32>
    %c0_11 = arith.constant 0 : index
    %c0_12 = arith.constant 0 : index
    %c96 = arith.constant 96 : index
    %10 = vector.load %arg3[%c0_11, %c0_12, %c96] : memref<2x32x256xf32, #tpu.memory_space<vmem>>, vector<1x32x32xf32>
    %11 = vector.shape_cast %10 : vector<1x32x32xf32> to vector<32x32xf32>
    %c0_13 = arith.constant 0 : index
    %c0_14 = arith.constant 0 : index
    %c128 = arith.constant 128 : index
    %12 = vector.load %arg3[%c0_13, %c0_14, %c128] : memref<2x32x256xf32, #tpu.memory_space<vmem>>, vector<1x32x128xf32>
    %13 = vector.shape_cast %12 : vector<1x32x128xf32> to vector<32x128xf32>
    %c0_15 = arith.constant 0 : index
    %c0_16 = arith.constant 0 : index
    %c0_17 = arith.constant 0 : index
    %14 = vector.load %arg4[%c0_15, %c0_16, %c0_17] : memref<2x128x32xf32, #tpu.memory_space<vmem>>, vector<1x128x32xf32>
    %15 = vector.shape_cast %14 : vector<1x128x32xf32> to vector<128x32xf32>
    %c0_18 = arith.constant 0 : index
    %c0_19 = arith.constant 0 : index
    %16 = vector.load %arg5[%c0_18, %c0_19] : memref<21x128xf32, #tpu.memory_space<vmem>>, vector<1x32xf32>
    %c1 = arith.constant 1 : index
    %c0_20 = arith.constant 0 : index
    %17 = vector.load %arg5[%c1, %c0_20] : memref<21x128xf32, #tpu.memory_space<vmem>>, vector<1x32xf32>
    %c2 = arith.constant 2 : index
    %c0_21 = arith.constant 0 : index
    %18 = vector.load %arg5[%c2, %c0_21] : memref<21x128xf32, #tpu.memory_space<vmem>>, vector<1x32xf32>
    %c3 = arith.constant 3 : index
    %c0_22 = arith.constant 0 : index
    %19 = vector.load %arg5[%c3, %c0_22] : memref<21x128xf32, #tpu.memory_space<vmem>>, vector<1x32xf32>
    %c4 = arith.constant 4 : index
    %c0_23 = arith.constant 0 : index
    %20 = vector.load %arg5[%c4, %c0_23] : memref<21x128xf32, #tpu.memory_space<vmem>>, vector<1x32xf32>
    %c5 = arith.constant 5 : index
    %c0_24 = arith.constant 0 : index
    %21 = vector.load %arg5[%c5, %c0_24] : memref<21x128xf32, #tpu.memory_space<vmem>>, vector<1x32xf32>
    %c6 = arith.constant 6 : index
    %c0_25 = arith.constant 0 : index
    %22 = vector.load %arg5[%c6, %c0_25] : memref<21x128xf32, #tpu.memory_space<vmem>>, vector<1x128xf32>
    %c7 = arith.constant 7 : index
    %c0_26 = arith.constant 0 : index
    %23 = vector.load %arg5[%c7, %c0_26] : memref<21x128xf32, #tpu.memory_space<vmem>>, vector<1x32xf32>
    %c8 = arith.constant 8 : index
    %c0_27 = arith.constant 0 : index
    %24 = vector.load %arg5[%c8, %c0_27] : memref<21x128xf32, #tpu.memory_space<vmem>>, vector<1x32xf32>
    %c9 = arith.constant 9 : index
    %c0_28 = arith.constant 0 : index
    %25 = vector.load %arg5[%c9, %c0_28] : memref<21x128xf32, #tpu.memory_space<vmem>>, vector<1x32xf32>
    %cst = arith.constant dense<0.000000e+00> : vector<10x32xf32>
    %26 = tpu.matmul %3, %5, %cst {dimension_numbers = #tpu.dot_dimension_numbers<[1], [0], [0], [1], [0, 0, 1, 1], [], []>} : vector<10x32xf32>, vector<32x32xf32>, vector<10x32xf32> -> vector<10x32xf32>
    %27 = vector.broadcast %16 : vector<1x32xf32> to vector<10x32xf32>
    %28 = arith.addf %26, %27 : vector<10x32xf32>
    %cst_29 = arith.constant dense<0.000000e+00> : vector<10x32xf32>
    %29 = tpu.matmul %3, %7, %cst_29 {dimension_numbers = #tpu.dot_dimension_numbers<[1], [0], [0], [1], [0, 0, 1, 1], [], []>} : vector<10x32xf32>, vector<32x32xf32>, vector<10x32xf32> -> vector<10x32xf32>
    %30 = vector.broadcast %17 : vector<1x32xf32> to vector<10x32xf32>
    %31 = arith.addf %29, %30 : vector<10x32xf32>
    %cst_30 = arith.constant dense<0.000000e+00> : vector<10x32xf32>
    %32 = tpu.matmul %3, %9, %cst_30 {dimension_numbers = #tpu.dot_dimension_numbers<[1], [0], [0], [1], [0, 0, 1, 1], [], []>} : vector<10x32xf32>, vector<32x32xf32>, vector<10x32xf32> -> vector<10x32xf32>
    %33 = vector.broadcast %18 : vector<1x32xf32> to vector<10x32xf32>
    %34 = arith.addf %32, %33 : vector<10x32xf32>
    %35 = vector.extract_strided_slice %28 {offsets = [0, 0], sizes = [10, 8], strides = [1, 1]} : vector<10x32xf32> to vector<10x8xf32>
    %36 = vector.extract_strided_slice %31 {offsets = [0, 0], sizes = [10, 8], strides = [1, 1]} : vector<10x32xf32> to vector<10x8xf32>
    %37 = vector.extract_strided_slice %34 {offsets = [0, 0], sizes = [10, 8], strides = [1, 1]} : vector<10x32xf32> to vector<10x8xf32>
    %cst_31 = arith.constant dense<0.000000e+00> : vector<10x10xf32>
    %38 = tpu.matmul %35, %36, %cst_31 {dimension_numbers = #tpu.dot_dimension_numbers<[1], [1], [0], [0], [0, 0, 1, 0], [], []>} : vector<10x8xf32>, vector<10x8xf32>, vector<10x10xf32> -> vector<10x10xf32>
    %cst_32 = arith.constant 0.353553385 : f32
    %39 = vector.broadcast %cst_32 : f32 to vector<10x10xf32>
    %40 = arith.mulf %38, %39 : vector<10x10xf32>
    %cst_33 = arith.constant dense<0xFF800000> : vector<10xf32>
    %41 = vector.multi_reduction <maximumf>, %40, %cst_33 [1] : vector<10x10xf32> to vector<10xf32>
    %42 = vector.shape_cast %41 : vector<10xf32> to vector<10x1xf32>
    %43 = vector.broadcast %42 : vector<10x1xf32> to vector<10x10xf32>
    %44 = arith.subf %40, %43 : vector<10x10xf32>
    %45 = math.exp %44 : vector<10x10xf32>
    %cst_34 = arith.constant dense<0.000000e+00> : vector<10xf32>
    %46 = vector.multi_reduction <add>, %45, %cst_34 [1] : vector<10x10xf32> to vector<10xf32>
    %47 = vector.shape_cast %46 : vector<10xf32> to vector<10x1xf32>
    %48 = tpu.reciprocal %47 {approx = true} : vector<10x1xf32> -> vector<10x1xf32>
    %49 = vector.broadcast %48 : vector<10x1xf32> to vector<10x10xf32>
    %50 = arith.mulf %45, %49 : vector<10x10xf32>
    %cst_35 = arith.constant dense<0.000000e+00> : vector<10x8xf32>
    %51 = tpu.matmul %50, %37, %cst_35 {dimension_numbers = #tpu.dot_dimension_numbers<[1], [0], [0], [1], [0, 0, 1, 1], [], []>} : vector<10x10xf32>, vector<10x8xf32>, vector<10x8xf32> -> vector<10x8xf32>
    %52 = vector.extract_strided_slice %28 {offsets = [0, 8], sizes = [10, 8], strides = [1, 1]} : vector<10x32xf32> to vector<10x8xf32>
    %53 = vector.extract_strided_slice %31 {offsets = [0, 8], sizes = [10, 8], strides = [1, 1]} : vector<10x32xf32> to vector<10x8xf32>
    %54 = vector.extract_strided_slice %34 {offsets = [0, 8], sizes = [10, 8], strides = [1, 1]} : vector<10x32xf32> to vector<10x8xf32>
    %cst_36 = arith.constant dense<0.000000e+00> : vector<10x10xf32>
    %55 = tpu.matmul %52, %53, %cst_36 {dimension_numbers = #tpu.dot_dimension_numbers<[1], [1], [0], [0], [0, 0, 1, 0], [], []>} : vector<10x8xf32>, vector<10x8xf32>, vector<10x10xf32> -> vector<10x10xf32>
    %cst_37 = arith.constant 0.353553385 : f32
    %56 = vector.broadcast %cst_37 : f32 to vector<10x10xf32>
    %57 = arith.mulf %55, %56 : vector<10x10xf32>
    %cst_38 = arith.constant dense<0xFF800000> : vector<10xf32>
    %58 = vector.multi_reduction <maximumf>, %57, %cst_38 [1] : vector<10x10xf32> to vector<10xf32>
    %59 = vector.shape_cast %58 : vector<10xf32> to vector<10x1xf32>
    %60 = vector.broadcast %59 : vector<10x1xf32> to vector<10x10xf32>
    %61 = arith.subf %57, %60 : vector<10x10xf32>
    %62 = math.exp %61 : vector<10x10xf32>
    %cst_39 = arith.constant dense<0.000000e+00> : vector<10xf32>
    %63 = vector.multi_reduction <add>, %62, %cst_39 [1] : vector<10x10xf32> to vector<10xf32>
    %64 = vector.shape_cast %63 : vector<10xf32> to vector<10x1xf32>
    %65 = tpu.reciprocal %64 {approx = true} : vector<10x1xf32> -> vector<10x1xf32>
    %66 = vector.broadcast %65 : vector<10x1xf32> to vector<10x10xf32>
    %67 = arith.mulf %62, %66 : vector<10x10xf32>
    %cst_40 = arith.constant dense<0.000000e+00> : vector<10x8xf32>
    %68 = tpu.matmul %67, %54, %cst_40 {dimension_numbers = #tpu.dot_dimension_numbers<[1], [0], [0], [1], [0, 0, 1, 1], [], []>} : vector<10x10xf32>, vector<10x8xf32>, vector<10x8xf32> -> vector<10x8xf32>
    %69 = vector.extract_strided_slice %28 {offsets = [0, 16], sizes = [10, 8], strides = [1, 1]} : vector<10x32xf32> to vector<10x8xf32>
    %70 = vector.extract_strided_slice %31 {offsets = [0, 16], sizes = [10, 8], strides = [1, 1]} : vector<10x32xf32> to vector<10x8xf32>
    %71 = vector.extract_strided_slice %34 {offsets = [0, 16], sizes = [10, 8], strides = [1, 1]} : vector<10x32xf32> to vector<10x8xf32>
    %cst_41 = arith.constant dense<0.000000e+00> : vector<10x10xf32>
    %72 = tpu.matmul %69, %70, %cst_41 {dimension_numbers = #tpu.dot_dimension_numbers<[1], [1], [0], [0], [0, 0, 1, 0], [], []>} : vector<10x8xf32>, vector<10x8xf32>, vector<10x10xf32> -> vector<10x10xf32>
    %cst_42 = arith.constant 0.353553385 : f32
    %73 = vector.broadcast %cst_42 : f32 to vector<10x10xf32>
    %74 = arith.mulf %72, %73 : vector<10x10xf32>
    %cst_43 = arith.constant dense<0xFF800000> : vector<10xf32>
    %75 = vector.multi_reduction <maximumf>, %74, %cst_43 [1] : vector<10x10xf32> to vector<10xf32>
    %76 = vector.shape_cast %75 : vector<10xf32> to vector<10x1xf32>
    %77 = vector.broadcast %76 : vector<10x1xf32> to vector<10x10xf32>
    %78 = arith.subf %74, %77 : vector<10x10xf32>
    %79 = math.exp %78 : vector<10x10xf32>
    %cst_44 = arith.constant dense<0.000000e+00> : vector<10xf32>
    %80 = vector.multi_reduction <add>, %79, %cst_44 [1] : vector<10x10xf32> to vector<10xf32>
    %81 = vector.shape_cast %80 : vector<10xf32> to vector<10x1xf32>
    %82 = tpu.reciprocal %81 {approx = true} : vector<10x1xf32> -> vector<10x1xf32>
    %83 = vector.broadcast %82 : vector<10x1xf32> to vector<10x10xf32>
    %84 = arith.mulf %79, %83 : vector<10x10xf32>
    %cst_45 = arith.constant dense<0.000000e+00> : vector<10x8xf32>
    %85 = tpu.matmul %84, %71, %cst_45 {dimension_numbers = #tpu.dot_dimension_numbers<[1], [0], [0], [1], [0, 0, 1, 1], [], []>} : vector<10x10xf32>, vector<10x8xf32>, vector<10x8xf32> -> vector<10x8xf32>
    %86 = vector.extract_strided_slice %28 {offsets = [0, 24], sizes = [10, 8], strides = [1, 1]} : vector<10x32xf32> to vector<10x8xf32>
    %87 = vector.extract_strided_slice %31 {offsets = [0, 24], sizes = [10, 8], strides = [1, 1]} : vector<10x32xf32> to vector<10x8xf32>
    %88 = vector.extract_strided_slice %34 {offsets = [0, 24], sizes = [10, 8], strides = [1, 1]} : vector<10x32xf32> to vector<10x8xf32>
    %cst_46 = arith.constant dense<0.000000e+00> : vector<10x10xf32>
    %89 = tpu.matmul %86, %87, %cst_46 {dimension_numbers = #tpu.dot_dimension_numbers<[1], [1], [0], [0], [0, 0, 1, 0], [], []>} : vector<10x8xf32>, vector<10x8xf32>, vector<10x10xf32> -> vector<10x10xf32>
    %cst_47 = arith.constant 0.353553385 : f32
    %90 = vector.broadcast %cst_47 : f32 to vector<10x10xf32>
    %91 = arith.mulf %89, %90 : vector<10x10xf32>
    %cst_48 = arith.constant dense<0xFF800000> : vector<10xf32>
    %92 = vector.multi_reduction <maximumf>, %91, %cst_48 [1] : vector<10x10xf32> to vector<10xf32>
    %93 = vector.shape_cast %92 : vector<10xf32> to vector<10x1xf32>
    %94 = vector.broadcast %93 : vector<10x1xf32> to vector<10x10xf32>
    %95 = arith.subf %91, %94 : vector<10x10xf32>
    %96 = math.exp %95 : vector<10x10xf32>
    %cst_49 = arith.constant dense<0.000000e+00> : vector<10xf32>
    %97 = vector.multi_reduction <add>, %96, %cst_49 [1] : vector<10x10xf32> to vector<10xf32>
    %98 = vector.shape_cast %97 : vector<10xf32> to vector<10x1xf32>
    %99 = tpu.reciprocal %98 {approx = true} : vector<10x1xf32> -> vector<10x1xf32>
    %100 = vector.broadcast %99 : vector<10x1xf32> to vector<10x10xf32>
    %101 = arith.mulf %96, %100 : vector<10x10xf32>
    %cst_50 = arith.constant dense<0.000000e+00> : vector<10x8xf32>
    %102 = tpu.matmul %101, %88, %cst_50 {dimension_numbers = #tpu.dot_dimension_numbers<[1], [0], [0], [1], [0, 0, 1, 1], [], []>} : vector<10x10xf32>, vector<10x8xf32>, vector<10x8xf32> -> vector<10x8xf32>
    %103 = tpu.concatenate %51, %68, %85, %102 in 1 : vector<10x8xf32>, vector<10x8xf32>, vector<10x8xf32>, vector<10x8xf32> -> vector<10x32xf32>
    %cst_51 = arith.constant dense<0.000000e+00> : vector<10x32xf32>
    %104 = tpu.matmul %103, %11, %cst_51 {dimension_numbers = #tpu.dot_dimension_numbers<[1], [0], [0], [1], [0, 0, 1, 1], [], []>} : vector<10x32xf32>, vector<32x32xf32>, vector<10x32xf32> -> vector<10x32xf32>
    %105 = vector.broadcast %19 : vector<1x32xf32> to vector<10x32xf32>
    %106 = arith.addf %104, %105 : vector<10x32xf32>
    %107 = arith.addf %3, %106 : vector<10x32xf32>
    %cst_52 = arith.constant dense<0.000000e+00> : vector<10xf32>
    %108 = vector.multi_reduction <add>, %107, %cst_52 [1] : vector<10x32xf32> to vector<10xf32>
    %109 = vector.shape_cast %108 : vector<10xf32> to vector<10x1xf32>
    %cst_53 = arith.constant 3.200000e+01 : f32
    %110 = vector.broadcast %cst_53 : f32 to vector<10x1xf32>
    %111 = arith.divf %109, %110 : vector<10x1xf32>
    %112 = vector.broadcast %111 : vector<10x1xf32> to vector<10x32xf32>
    %113 = arith.subf %107, %112 : vector<10x32xf32>
    %114 = arith.mulf %113, %113 : vector<10x32xf32>
    %cst_54 = arith.constant dense<0.000000e+00> : vector<10xf32>
    %115 = vector.multi_reduction <add>, %114, %cst_54 [1] : vector<10x32xf32> to vector<10xf32>
    %116 = vector.shape_cast %115 : vector<10xf32> to vector<10x1xf32>
    %cst_55 = arith.constant 3.200000e+01 : f32
    %117 = vector.broadcast %cst_55 : f32 to vector<10x1xf32>
    %118 = arith.divf %116, %117 : vector<10x1xf32>
    %119 = vector.broadcast %111 : vector<10x1xf32> to vector<10x32xf32>
    %120 = arith.subf %107, %119 : vector<10x32xf32>
    %cst_56 = arith.constant 9.99999974E-6 : f32
    %121 = vector.broadcast %cst_56 : f32 to vector<10x1xf32>
    %122 = arith.addf %118, %121 : vector<10x1xf32>
    %123 = math.rsqrt %122 : vector<10x1xf32>
    %124 = vector.broadcast %123 : vector<10x1xf32> to vector<10x32xf32>
    %125 = arith.mulf %120, %124 : vector<10x32xf32>
    %126 = vector.broadcast %20 : vector<1x32xf32> to vector<10x32xf32>
    %127 = arith.mulf %125, %126 : vector<10x32xf32>
    %128 = vector.broadcast %21 : vector<1x32xf32> to vector<10x32xf32>
    %129 = arith.addf %127, %128 : vector<10x32xf32>
    %cst_57 = arith.constant dense<0.000000e+00> : vector<10x128xf32>
    %130 = tpu.matmul %129, %13, %cst_57 {dimension_numbers = #tpu.dot_dimension_numbers<[1], [0], [0], [1], [0, 0, 1, 1], [], []>} : vector<10x32xf32>, vector<32x128xf32>, vector<10x128xf32> -> vector<10x128xf32>
    %131 = vector.broadcast %22 : vector<1x128xf32> to vector<10x128xf32>
    %132 = arith.addf %130, %131 : vector<10x128xf32>
    %cst_58 = arith.constant 5.000000e-01 : f32
    %133 = vector.broadcast %cst_58 : f32 to vector<10x128xf32>
    %134 = arith.mulf %133, %132 : vector<10x128xf32>
    %cst_59 = arith.constant 0.707106769 : f32
    %135 = vector.broadcast %cst_59 : f32 to vector<10x128xf32>
    %136 = arith.mulf %132, %135 : vector<10x128xf32>
    %137 = math.absf %136 : vector<10x128xf32>
    %cst_60 = arith.constant 0.327591091 : f32
    %138 = vector.broadcast %cst_60 : f32 to vector<10x128xf32>
    %139 = arith.mulf %138, %137 : vector<10x128xf32>
    %cst_61 = arith.constant 1.000000e+00 : f32
    %140 = vector.broadcast %cst_61 : f32 to vector<10x128xf32>
    %141 = arith.addf %140, %139 : vector<10x128xf32>
    %142 = tpu.reciprocal %141 {approx = true} : vector<10x128xf32> -> vector<10x128xf32>
    %cst_62 = arith.constant 1.06140542 : f32
    %143 = vector.broadcast %cst_62 : f32 to vector<10x128xf32>
    %144 = arith.mulf %143, %142 : vector<10x128xf32>
    %cst_63 = arith.constant -1.45315206 : f32
    %145 = vector.broadcast %cst_63 : f32 to vector<10x128xf32>
    %146 = arith.addf %144, %145 : vector<10x128xf32>
    %147 = arith.mulf %146, %142 : vector<10x128xf32>
    %cst_64 = arith.constant 1.42141378 : f32
    %148 = vector.broadcast %cst_64 : f32 to vector<10x128xf32>
    %149 = arith.addf %147, %148 : vector<10x128xf32>
    %150 = arith.mulf %149, %142 : vector<10x128xf32>
    %cst_65 = arith.constant -0.284496725 : f32
    %151 = vector.broadcast %cst_65 : f32 to vector<10x128xf32>
    %152 = arith.addf %150, %151 : vector<10x128xf32>
    %153 = arith.mulf %152, %142 : vector<10x128xf32>
    %cst_66 = arith.constant 0.254829586 : f32
    %154 = vector.broadcast %cst_66 : f32 to vector<10x128xf32>
    %155 = arith.addf %153, %154 : vector<10x128xf32>
    %156 = arith.mulf %155, %142 : vector<10x128xf32>
    %cst_67 = arith.constant 0.000000e+00 : f32
    %157 = vector.broadcast %cst_67 : f32 to vector<10x128xf32>
    %158 = arith.subf %157, %137 : vector<10x128xf32>
    %159 = arith.mulf %158, %137 : vector<10x128xf32>
    %160 = math.exp %159 : vector<10x128xf32>
    %161 = arith.mulf %156, %160 : vector<10x128xf32>
    %cst_68 = arith.constant 1.000000e+00 : f32
    %162 = vector.broadcast %cst_68 : f32 to vector<10x128xf32>
    %163 = arith.subf %162, %161 : vector<10x128xf32>
    %cst_69 = arith.constant 0.000000e+00 : f32
    %164 = vector.broadcast %cst_69 : f32 to vector<10x128xf32>
    %165 = arith.cmpf oge, %136, %164 : vector<10x128xf32>
    %cst_70 = arith.constant 0.000000e+00 : f32
    %166 = vector.broadcast %cst_70 : f32 to vector<10x128xf32>
    %167 = arith.subf %166, %163 : vector<10x128xf32>
    %168 = arith.select %165, %163, %167 : vector<10x128xi1>, vector<10x128xf32>
    %cst_71 = arith.constant 1.000000e+00 : f32
    %169 = vector.broadcast %cst_71 : f32 to vector<10x128xf32>
    %170 = arith.addf %169, %168 : vector<10x128xf32>
    %171 = arith.mulf %134, %170 : vector<10x128xf32>
    %cst_72 = arith.constant dense<0.000000e+00> : vector<10x32xf32>
    %172 = tpu.matmul %171, %15, %cst_72 {dimension_numbers = #tpu.dot_dimension_numbers<[1], [0], [0], [1], [0, 0, 1, 1], [], []>} : vector<10x128xf32>, vector<128x32xf32>, vector<10x32xf32> -> vector<10x32xf32>
    %173 = vector.broadcast %23 : vector<1x32xf32> to vector<10x32xf32>
    %174 = arith.addf %172, %173 : vector<10x32xf32>
    %175 = arith.addf %129, %174 : vector<10x32xf32>
    %cst_73 = arith.constant dense<0.000000e+00> : vector<10xf32>
    %176 = vector.multi_reduction <add>, %175, %cst_73 [1] : vector<10x32xf32> to vector<10xf32>
    %177 = vector.shape_cast %176 : vector<10xf32> to vector<10x1xf32>
    %cst_74 = arith.constant 3.200000e+01 : f32
    %178 = vector.broadcast %cst_74 : f32 to vector<10x1xf32>
    %179 = arith.divf %177, %178 : vector<10x1xf32>
    %180 = vector.broadcast %179 : vector<10x1xf32> to vector<10x32xf32>
    %181 = arith.subf %175, %180 : vector<10x32xf32>
    %182 = arith.mulf %181, %181 : vector<10x32xf32>
    %cst_75 = arith.constant dense<0.000000e+00> : vector<10xf32>
    %183 = vector.multi_reduction <add>, %182, %cst_75 [1] : vector<10x32xf32> to vector<10xf32>
    %184 = vector.shape_cast %183 : vector<10xf32> to vector<10x1xf32>
    %cst_76 = arith.constant 3.200000e+01 : f32
    %185 = vector.broadcast %cst_76 : f32 to vector<10x1xf32>
    %186 = arith.divf %184, %185 : vector<10x1xf32>
    %187 = vector.broadcast %179 : vector<10x1xf32> to vector<10x32xf32>
    %188 = arith.subf %175, %187 : vector<10x32xf32>
    %cst_77 = arith.constant 9.99999974E-6 : f32
    %189 = vector.broadcast %cst_77 : f32 to vector<10x1xf32>
    %190 = arith.addf %186, %189 : vector<10x1xf32>
    %191 = math.rsqrt %190 : vector<10x1xf32>
    %192 = vector.broadcast %191 : vector<10x1xf32> to vector<10x32xf32>
    %193 = arith.mulf %188, %192 : vector<10x32xf32>
    %194 = vector.broadcast %24 : vector<1x32xf32> to vector<10x32xf32>
    %195 = arith.mulf %193, %194 : vector<10x32xf32>
    %196 = vector.broadcast %25 : vector<1x32xf32> to vector<10x32xf32>
    %197 = arith.addf %195, %196 : vector<10x32xf32>
    %c1_78 = arith.constant 1 : index
    %c0_79 = arith.constant 0 : index
    %c0_80 = arith.constant 0 : index
    %198 = vector.load %arg3[%c1_78, %c0_79, %c0_80] : memref<2x32x256xf32, #tpu.memory_space<vmem>>, vector<1x32x32xf32>
    %199 = vector.shape_cast %198 : vector<1x32x32xf32> to vector<32x32xf32>
    %c1_81 = arith.constant 1 : index
    %c0_82 = arith.constant 0 : index
    %c32_83 = arith.constant 32 : index
    %200 = vector.load %arg3[%c1_81, %c0_82, %c32_83] : memref<2x32x256xf32, #tpu.memory_space<vmem>>, vector<1x32x32xf32>
    %201 = vector.shape_cast %200 : vector<1x32x32xf32> to vector<32x32xf32>
    %c1_84 = arith.constant 1 : index
    %c0_85 = arith.constant 0 : index
    %c64_86 = arith.constant 64 : index
    %202 = vector.load %arg3[%c1_84, %c0_85, %c64_86] : memref<2x32x256xf32, #tpu.memory_space<vmem>>, vector<1x32x32xf32>
    %203 = vector.shape_cast %202 : vector<1x32x32xf32> to vector<32x32xf32>
    %c1_87 = arith.constant 1 : index
    %c0_88 = arith.constant 0 : index
    %c96_89 = arith.constant 96 : index
    %204 = vector.load %arg3[%c1_87, %c0_88, %c96_89] : memref<2x32x256xf32, #tpu.memory_space<vmem>>, vector<1x32x32xf32>
    %205 = vector.shape_cast %204 : vector<1x32x32xf32> to vector<32x32xf32>
    %c1_90 = arith.constant 1 : index
    %c0_91 = arith.constant 0 : index
    %c128_92 = arith.constant 128 : index
    %206 = vector.load %arg3[%c1_90, %c0_91, %c128_92] : memref<2x32x256xf32, #tpu.memory_space<vmem>>, vector<1x32x128xf32>
    %207 = vector.shape_cast %206 : vector<1x32x128xf32> to vector<32x128xf32>
    %c1_93 = arith.constant 1 : index
    %c0_94 = arith.constant 0 : index
    %c0_95 = arith.constant 0 : index
    %208 = vector.load %arg4[%c1_93, %c0_94, %c0_95] : memref<2x128x32xf32, #tpu.memory_space<vmem>>, vector<1x128x32xf32>
    %209 = vector.shape_cast %208 : vector<1x128x32xf32> to vector<128x32xf32>
    %c10 = arith.constant 10 : index
    %c0_96 = arith.constant 0 : index
    %210 = vector.load %arg5[%c10, %c0_96] : memref<21x128xf32, #tpu.memory_space<vmem>>, vector<1x32xf32>
    %c11 = arith.constant 11 : index
    %c0_97 = arith.constant 0 : index
    %211 = vector.load %arg5[%c11, %c0_97] : memref<21x128xf32, #tpu.memory_space<vmem>>, vector<1x32xf32>
    %c12 = arith.constant 12 : index
    %c0_98 = arith.constant 0 : index
    %212 = vector.load %arg5[%c12, %c0_98] : memref<21x128xf32, #tpu.memory_space<vmem>>, vector<1x32xf32>
    %c13 = arith.constant 13 : index
    %c0_99 = arith.constant 0 : index
    %213 = vector.load %arg5[%c13, %c0_99] : memref<21x128xf32, #tpu.memory_space<vmem>>, vector<1x32xf32>
    %c14 = arith.constant 14 : index
    %c0_100 = arith.constant 0 : index
    %214 = vector.load %arg5[%c14, %c0_100] : memref<21x128xf32, #tpu.memory_space<vmem>>, vector<1x32xf32>
    %c15 = arith.constant 15 : index
    %c0_101 = arith.constant 0 : index
    %215 = vector.load %arg5[%c15, %c0_101] : memref<21x128xf32, #tpu.memory_space<vmem>>, vector<1x32xf32>
    %c16 = arith.constant 16 : index
    %c0_102 = arith.constant 0 : index
    %216 = vector.load %arg5[%c16, %c0_102] : memref<21x128xf32, #tpu.memory_space<vmem>>, vector<1x128xf32>
    %c17 = arith.constant 17 : index
    %c0_103 = arith.constant 0 : index
    %217 = vector.load %arg5[%c17, %c0_103] : memref<21x128xf32, #tpu.memory_space<vmem>>, vector<1x32xf32>
    %c18 = arith.constant 18 : index
    %c0_104 = arith.constant 0 : index
    %218 = vector.load %arg5[%c18, %c0_104] : memref<21x128xf32, #tpu.memory_space<vmem>>, vector<1x32xf32>
    %c19 = arith.constant 19 : index
    %c0_105 = arith.constant 0 : index
    %219 = vector.load %arg5[%c19, %c0_105] : memref<21x128xf32, #tpu.memory_space<vmem>>, vector<1x32xf32>
    %cst_106 = arith.constant dense<0.000000e+00> : vector<10x32xf32>
    %220 = tpu.matmul %197, %199, %cst_106 {dimension_numbers = #tpu.dot_dimension_numbers<[1], [0], [0], [1], [0, 0, 1, 1], [], []>} : vector<10x32xf32>, vector<32x32xf32>, vector<10x32xf32> -> vector<10x32xf32>
    %221 = vector.broadcast %210 : vector<1x32xf32> to vector<10x32xf32>
    %222 = arith.addf %220, %221 : vector<10x32xf32>
    %cst_107 = arith.constant dense<0.000000e+00> : vector<10x32xf32>
    %223 = tpu.matmul %197, %201, %cst_107 {dimension_numbers = #tpu.dot_dimension_numbers<[1], [0], [0], [1], [0, 0, 1, 1], [], []>} : vector<10x32xf32>, vector<32x32xf32>, vector<10x32xf32> -> vector<10x32xf32>
    %224 = vector.broadcast %211 : vector<1x32xf32> to vector<10x32xf32>
    %225 = arith.addf %223, %224 : vector<10x32xf32>
    %cst_108 = arith.constant dense<0.000000e+00> : vector<10x32xf32>
    %226 = tpu.matmul %197, %203, %cst_108 {dimension_numbers = #tpu.dot_dimension_numbers<[1], [0], [0], [1], [0, 0, 1, 1], [], []>} : vector<10x32xf32>, vector<32x32xf32>, vector<10x32xf32> -> vector<10x32xf32>
    %227 = vector.broadcast %212 : vector<1x32xf32> to vector<10x32xf32>
    %228 = arith.addf %226, %227 : vector<10x32xf32>
    %229 = vector.extract_strided_slice %222 {offsets = [0, 0], sizes = [10, 8], strides = [1, 1]} : vector<10x32xf32> to vector<10x8xf32>
    %230 = vector.extract_strided_slice %225 {offsets = [0, 0], sizes = [10, 8], strides = [1, 1]} : vector<10x32xf32> to vector<10x8xf32>
    %231 = vector.extract_strided_slice %228 {offsets = [0, 0], sizes = [10, 8], strides = [1, 1]} : vector<10x32xf32> to vector<10x8xf32>
    %cst_109 = arith.constant dense<0.000000e+00> : vector<10x10xf32>
    %232 = tpu.matmul %229, %230, %cst_109 {dimension_numbers = #tpu.dot_dimension_numbers<[1], [1], [0], [0], [0, 0, 1, 0], [], []>} : vector<10x8xf32>, vector<10x8xf32>, vector<10x10xf32> -> vector<10x10xf32>
    %cst_110 = arith.constant 0.353553385 : f32
    %233 = vector.broadcast %cst_110 : f32 to vector<10x10xf32>
    %234 = arith.mulf %232, %233 : vector<10x10xf32>
    %cst_111 = arith.constant dense<0xFF800000> : vector<10xf32>
    %235 = vector.multi_reduction <maximumf>, %234, %cst_111 [1] : vector<10x10xf32> to vector<10xf32>
    %236 = vector.shape_cast %235 : vector<10xf32> to vector<10x1xf32>
    %237 = vector.broadcast %236 : vector<10x1xf32> to vector<10x10xf32>
    %238 = arith.subf %234, %237 : vector<10x10xf32>
    %239 = math.exp %238 : vector<10x10xf32>
    %cst_112 = arith.constant dense<0.000000e+00> : vector<10xf32>
    %240 = vector.multi_reduction <add>, %239, %cst_112 [1] : vector<10x10xf32> to vector<10xf32>
    %241 = vector.shape_cast %240 : vector<10xf32> to vector<10x1xf32>
    %242 = tpu.reciprocal %241 {approx = true} : vector<10x1xf32> -> vector<10x1xf32>
    %243 = vector.broadcast %242 : vector<10x1xf32> to vector<10x10xf32>
    %244 = arith.mulf %239, %243 : vector<10x10xf32>
    %cst_113 = arith.constant dense<0.000000e+00> : vector<10x8xf32>
    %245 = tpu.matmul %244, %231, %cst_113 {dimension_numbers = #tpu.dot_dimension_numbers<[1], [0], [0], [1], [0, 0, 1, 1], [], []>} : vector<10x10xf32>, vector<10x8xf32>, vector<10x8xf32> -> vector<10x8xf32>
    %246 = vector.extract_strided_slice %222 {offsets = [0, 8], sizes = [10, 8], strides = [1, 1]} : vector<10x32xf32> to vector<10x8xf32>
    %247 = vector.extract_strided_slice %225 {offsets = [0, 8], sizes = [10, 8], strides = [1, 1]} : vector<10x32xf32> to vector<10x8xf32>
    %248 = vector.extract_strided_slice %228 {offsets = [0, 8], sizes = [10, 8], strides = [1, 1]} : vector<10x32xf32> to vector<10x8xf32>
    %cst_114 = arith.constant dense<0.000000e+00> : vector<10x10xf32>
    %249 = tpu.matmul %246, %247, %cst_114 {dimension_numbers = #tpu.dot_dimension_numbers<[1], [1], [0], [0], [0, 0, 1, 0], [], []>} : vector<10x8xf32>, vector<10x8xf32>, vector<10x10xf32> -> vector<10x10xf32>
    %cst_115 = arith.constant 0.353553385 : f32
    %250 = vector.broadcast %cst_115 : f32 to vector<10x10xf32>
    %251 = arith.mulf %249, %250 : vector<10x10xf32>
    %cst_116 = arith.constant dense<0xFF800000> : vector<10xf32>
    %252 = vector.multi_reduction <maximumf>, %251, %cst_116 [1] : vector<10x10xf32> to vector<10xf32>
    %253 = vector.shape_cast %252 : vector<10xf32> to vector<10x1xf32>
    %254 = vector.broadcast %253 : vector<10x1xf32> to vector<10x10xf32>
    %255 = arith.subf %251, %254 : vector<10x10xf32>
    %256 = math.exp %255 : vector<10x10xf32>
    %cst_117 = arith.constant dense<0.000000e+00> : vector<10xf32>
    %257 = vector.multi_reduction <add>, %256, %cst_117 [1] : vector<10x10xf32> to vector<10xf32>
    %258 = vector.shape_cast %257 : vector<10xf32> to vector<10x1xf32>
    %259 = tpu.reciprocal %258 {approx = true} : vector<10x1xf32> -> vector<10x1xf32>
    %260 = vector.broadcast %259 : vector<10x1xf32> to vector<10x10xf32>
    %261 = arith.mulf %256, %260 : vector<10x10xf32>
    %cst_118 = arith.constant dense<0.000000e+00> : vector<10x8xf32>
    %262 = tpu.matmul %261, %248, %cst_118 {dimension_numbers = #tpu.dot_dimension_numbers<[1], [0], [0], [1], [0, 0, 1, 1], [], []>} : vector<10x10xf32>, vector<10x8xf32>, vector<10x8xf32> -> vector<10x8xf32>
    %263 = vector.extract_strided_slice %222 {offsets = [0, 16], sizes = [10, 8], strides = [1, 1]} : vector<10x32xf32> to vector<10x8xf32>
    %264 = vector.extract_strided_slice %225 {offsets = [0, 16], sizes = [10, 8], strides = [1, 1]} : vector<10x32xf32> to vector<10x8xf32>
    %265 = vector.extract_strided_slice %228 {offsets = [0, 16], sizes = [10, 8], strides = [1, 1]} : vector<10x32xf32> to vector<10x8xf32>
    %cst_119 = arith.constant dense<0.000000e+00> : vector<10x10xf32>
    %266 = tpu.matmul %263, %264, %cst_119 {dimension_numbers = #tpu.dot_dimension_numbers<[1], [1], [0], [0], [0, 0, 1, 0], [], []>} : vector<10x8xf32>, vector<10x8xf32>, vector<10x10xf32> -> vector<10x10xf32>
    %cst_120 = arith.constant 0.353553385 : f32
    %267 = vector.broadcast %cst_120 : f32 to vector<10x10xf32>
    %268 = arith.mulf %266, %267 : vector<10x10xf32>
    %cst_121 = arith.constant dense<0xFF800000> : vector<10xf32>
    %269 = vector.multi_reduction <maximumf>, %268, %cst_121 [1] : vector<10x10xf32> to vector<10xf32>
    %270 = vector.shape_cast %269 : vector<10xf32> to vector<10x1xf32>
    %271 = vector.broadcast %270 : vector<10x1xf32> to vector<10x10xf32>
    %272 = arith.subf %268, %271 : vector<10x10xf32>
    %273 = math.exp %272 : vector<10x10xf32>
    %cst_122 = arith.constant dense<0.000000e+00> : vector<10xf32>
    %274 = vector.multi_reduction <add>, %273, %cst_122 [1] : vector<10x10xf32> to vector<10xf32>
    %275 = vector.shape_cast %274 : vector<10xf32> to vector<10x1xf32>
    %276 = tpu.reciprocal %275 {approx = true} : vector<10x1xf32> -> vector<10x1xf32>
    %277 = vector.broadcast %276 : vector<10x1xf32> to vector<10x10xf32>
    %278 = arith.mulf %273, %277 : vector<10x10xf32>
    %cst_123 = arith.constant dense<0.000000e+00> : vector<10x8xf32>
    %279 = tpu.matmul %278, %265, %cst_123 {dimension_numbers = #tpu.dot_dimension_numbers<[1], [0], [0], [1], [0, 0, 1, 1], [], []>} : vector<10x10xf32>, vector<10x8xf32>, vector<10x8xf32> -> vector<10x8xf32>
    %280 = vector.extract_strided_slice %222 {offsets = [0, 24], sizes = [10, 8], strides = [1, 1]} : vector<10x32xf32> to vector<10x8xf32>
    %281 = vector.extract_strided_slice %225 {offsets = [0, 24], sizes = [10, 8], strides = [1, 1]} : vector<10x32xf32> to vector<10x8xf32>
    %282 = vector.extract_strided_slice %228 {offsets = [0, 24], sizes = [10, 8], strides = [1, 1]} : vector<10x32xf32> to vector<10x8xf32>
    %cst_124 = arith.constant dense<0.000000e+00> : vector<10x10xf32>
    %283 = tpu.matmul %280, %281, %cst_124 {dimension_numbers = #tpu.dot_dimension_numbers<[1], [1], [0], [0], [0, 0, 1, 0], [], []>} : vector<10x8xf32>, vector<10x8xf32>, vector<10x10xf32> -> vector<10x10xf32>
    %cst_125 = arith.constant 0.353553385 : f32
    %284 = vector.broadcast %cst_125 : f32 to vector<10x10xf32>
    %285 = arith.mulf %283, %284 : vector<10x10xf32>
    %cst_126 = arith.constant dense<0xFF800000> : vector<10xf32>
    %286 = vector.multi_reduction <maximumf>, %285, %cst_126 [1] : vector<10x10xf32> to vector<10xf32>
    %287 = vector.shape_cast %286 : vector<10xf32> to vector<10x1xf32>
    %288 = vector.broadcast %287 : vector<10x1xf32> to vector<10x10xf32>
    %289 = arith.subf %285, %288 : vector<10x10xf32>
    %290 = math.exp %289 : vector<10x10xf32>
    %cst_127 = arith.constant dense<0.000000e+00> : vector<10xf32>
    %291 = vector.multi_reduction <add>, %290, %cst_127 [1] : vector<10x10xf32> to vector<10xf32>
    %292 = vector.shape_cast %291 : vector<10xf32> to vector<10x1xf32>
    %293 = tpu.reciprocal %292 {approx = true} : vector<10x1xf32> -> vector<10x1xf32>
    %294 = vector.broadcast %293 : vector<10x1xf32> to vector<10x10xf32>
    %295 = arith.mulf %290, %294 : vector<10x10xf32>
    %cst_128 = arith.constant dense<0.000000e+00> : vector<10x8xf32>
    %296 = tpu.matmul %295, %282, %cst_128 {dimension_numbers = #tpu.dot_dimension_numbers<[1], [0], [0], [1], [0, 0, 1, 1], [], []>} : vector<10x10xf32>, vector<10x8xf32>, vector<10x8xf32> -> vector<10x8xf32>
    %297 = tpu.concatenate %245, %262, %279, %296 in 1 : vector<10x8xf32>, vector<10x8xf32>, vector<10x8xf32>, vector<10x8xf32> -> vector<10x32xf32>
    %cst_129 = arith.constant dense<0.000000e+00> : vector<10x32xf32>
    %298 = tpu.matmul %297, %205, %cst_129 {dimension_numbers = #tpu.dot_dimension_numbers<[1], [0], [0], [1], [0, 0, 1, 1], [], []>} : vector<10x32xf32>, vector<32x32xf32>, vector<10x32xf32> -> vector<10x32xf32>
    %299 = vector.broadcast %213 : vector<1x32xf32> to vector<10x32xf32>
    %300 = arith.addf %298, %299 : vector<10x32xf32>
    %301 = arith.addf %197, %300 : vector<10x32xf32>
    %cst_130 = arith.constant dense<0.000000e+00> : vector<10xf32>
    %302 = vector.multi_reduction <add>, %301, %cst_130 [1] : vector<10x32xf32> to vector<10xf32>
    %303 = vector.shape_cast %302 : vector<10xf32> to vector<10x1xf32>
    %cst_131 = arith.constant 3.200000e+01 : f32
    %304 = vector.broadcast %cst_131 : f32 to vector<10x1xf32>
    %305 = arith.divf %303, %304 : vector<10x1xf32>
    %306 = vector.broadcast %305 : vector<10x1xf32> to vector<10x32xf32>
    %307 = arith.subf %301, %306 : vector<10x32xf32>
    %308 = arith.mulf %307, %307 : vector<10x32xf32>
    %cst_132 = arith.constant dense<0.000000e+00> : vector<10xf32>
    %309 = vector.multi_reduction <add>, %308, %cst_132 [1] : vector<10x32xf32> to vector<10xf32>
    %310 = vector.shape_cast %309 : vector<10xf32> to vector<10x1xf32>
    %cst_133 = arith.constant 3.200000e+01 : f32
    %311 = vector.broadcast %cst_133 : f32 to vector<10x1xf32>
    %312 = arith.divf %310, %311 : vector<10x1xf32>
    %313 = vector.broadcast %305 : vector<10x1xf32> to vector<10x32xf32>
    %314 = arith.subf %301, %313 : vector<10x32xf32>
    %cst_134 = arith.constant 9.99999974E-6 : f32
    %315 = vector.broadcast %cst_134 : f32 to vector<10x1xf32>
    %316 = arith.addf %312, %315 : vector<10x1xf32>
    %317 = math.rsqrt %316 : vector<10x1xf32>
    %318 = vector.broadcast %317 : vector<10x1xf32> to vector<10x32xf32>
    %319 = arith.mulf %314, %318 : vector<10x32xf32>
    %320 = vector.broadcast %214 : vector<1x32xf32> to vector<10x32xf32>
    %321 = arith.mulf %319, %320 : vector<10x32xf32>
    %322 = vector.broadcast %215 : vector<1x32xf32> to vector<10x32xf32>
    %323 = arith.addf %321, %322 : vector<10x32xf32>
    %cst_135 = arith.constant dense<0.000000e+00> : vector<10x128xf32>
    %324 = tpu.matmul %323, %207, %cst_135 {dimension_numbers = #tpu.dot_dimension_numbers<[1], [0], [0], [1], [0, 0, 1, 1], [], []>} : vector<10x32xf32>, vector<32x128xf32>, vector<10x128xf32> -> vector<10x128xf32>
    %325 = vector.broadcast %216 : vector<1x128xf32> to vector<10x128xf32>
    %326 = arith.addf %324, %325 : vector<10x128xf32>
    %cst_136 = arith.constant 5.000000e-01 : f32
    %327 = vector.broadcast %cst_136 : f32 to vector<10x128xf32>
    %328 = arith.mulf %327, %326 : vector<10x128xf32>
    %cst_137 = arith.constant 0.707106769 : f32
    %329 = vector.broadcast %cst_137 : f32 to vector<10x128xf32>
    %330 = arith.mulf %326, %329 : vector<10x128xf32>
    %331 = math.absf %330 : vector<10x128xf32>
    %cst_138 = arith.constant 0.327591091 : f32
    %332 = vector.broadcast %cst_138 : f32 to vector<10x128xf32>
    %333 = arith.mulf %332, %331 : vector<10x128xf32>
    %cst_139 = arith.constant 1.000000e+00 : f32
    %334 = vector.broadcast %cst_139 : f32 to vector<10x128xf32>
    %335 = arith.addf %334, %333 : vector<10x128xf32>
    %336 = tpu.reciprocal %335 {approx = true} : vector<10x128xf32> -> vector<10x128xf32>
    %cst_140 = arith.constant 1.06140542 : f32
    %337 = vector.broadcast %cst_140 : f32 to vector<10x128xf32>
    %338 = arith.mulf %337, %336 : vector<10x128xf32>
    %cst_141 = arith.constant -1.45315206 : f32
    %339 = vector.broadcast %cst_141 : f32 to vector<10x128xf32>
    %340 = arith.addf %338, %339 : vector<10x128xf32>
    %341 = arith.mulf %340, %336 : vector<10x128xf32>
    %cst_142 = arith.constant 1.42141378 : f32
    %342 = vector.broadcast %cst_142 : f32 to vector<10x128xf32>
    %343 = arith.addf %341, %342 : vector<10x128xf32>
    %344 = arith.mulf %343, %336 : vector<10x128xf32>
    %cst_143 = arith.constant -0.284496725 : f32
    %345 = vector.broadcast %cst_143 : f32 to vector<10x128xf32>
    %346 = arith.addf %344, %345 : vector<10x128xf32>
    %347 = arith.mulf %346, %336 : vector<10x128xf32>
    %cst_144 = arith.constant 0.254829586 : f32
    %348 = vector.broadcast %cst_144 : f32 to vector<10x128xf32>
    %349 = arith.addf %347, %348 : vector<10x128xf32>
    %350 = arith.mulf %349, %336 : vector<10x128xf32>
    %cst_145 = arith.constant 0.000000e+00 : f32
    %351 = vector.broadcast %cst_145 : f32 to vector<10x128xf32>
    %352 = arith.subf %351, %331 : vector<10x128xf32>
    %353 = arith.mulf %352, %331 : vector<10x128xf32>
    %354 = math.exp %353 : vector<10x128xf32>
    %355 = arith.mulf %350, %354 : vector<10x128xf32>
    %cst_146 = arith.constant 1.000000e+00 : f32
    %356 = vector.broadcast %cst_146 : f32 to vector<10x128xf32>
    %357 = arith.subf %356, %355 : vector<10x128xf32>
    %cst_147 = arith.constant 0.000000e+00 : f32
    %358 = vector.broadcast %cst_147 : f32 to vector<10x128xf32>
    %359 = arith.cmpf oge, %330, %358 : vector<10x128xf32>
    %cst_148 = arith.constant 0.000000e+00 : f32
    %360 = vector.broadcast %cst_148 : f32 to vector<10x128xf32>
    %361 = arith.subf %360, %357 : vector<10x128xf32>
    %362 = arith.select %359, %357, %361 : vector<10x128xi1>, vector<10x128xf32>
    %cst_149 = arith.constant 1.000000e+00 : f32
    %363 = vector.broadcast %cst_149 : f32 to vector<10x128xf32>
    %364 = arith.addf %363, %362 : vector<10x128xf32>
    %365 = arith.mulf %328, %364 : vector<10x128xf32>
    %cst_150 = arith.constant dense<0.000000e+00> : vector<10x32xf32>
    %366 = tpu.matmul %365, %209, %cst_150 {dimension_numbers = #tpu.dot_dimension_numbers<[1], [0], [0], [1], [0, 0, 1, 1], [], []>} : vector<10x128xf32>, vector<128x32xf32>, vector<10x32xf32> -> vector<10x32xf32>
    %367 = vector.broadcast %217 : vector<1x32xf32> to vector<10x32xf32>
    %368 = arith.addf %366, %367 : vector<10x32xf32>
    %369 = arith.addf %323, %368 : vector<10x32xf32>
    %cst_151 = arith.constant dense<0.000000e+00> : vector<10xf32>
    %370 = vector.multi_reduction <add>, %369, %cst_151 [1] : vector<10x32xf32> to vector<10xf32>
    %371 = vector.shape_cast %370 : vector<10xf32> to vector<10x1xf32>
    %cst_152 = arith.constant 3.200000e+01 : f32
    %372 = vector.broadcast %cst_152 : f32 to vector<10x1xf32>
    %373 = arith.divf %371, %372 : vector<10x1xf32>
    %374 = vector.broadcast %373 : vector<10x1xf32> to vector<10x32xf32>
    %375 = arith.subf %369, %374 : vector<10x32xf32>
    %376 = arith.mulf %375, %375 : vector<10x32xf32>
    %cst_153 = arith.constant dense<0.000000e+00> : vector<10xf32>
    %377 = vector.multi_reduction <add>, %376, %cst_153 [1] : vector<10x32xf32> to vector<10xf32>
    %378 = vector.shape_cast %377 : vector<10xf32> to vector<10x1xf32>
    %cst_154 = arith.constant 3.200000e+01 : f32
    %379 = vector.broadcast %cst_154 : f32 to vector<10x1xf32>
    %380 = arith.divf %378, %379 : vector<10x1xf32>
    %381 = vector.broadcast %373 : vector<10x1xf32> to vector<10x32xf32>
    %382 = arith.subf %369, %381 : vector<10x32xf32>
    %cst_155 = arith.constant 9.99999974E-6 : f32
    %383 = vector.broadcast %cst_155 : f32 to vector<10x1xf32>
    %384 = arith.addf %380, %383 : vector<10x1xf32>
    %385 = math.rsqrt %384 : vector<10x1xf32>
    %386 = vector.broadcast %385 : vector<10x1xf32> to vector<10x32xf32>
    %387 = arith.mulf %382, %386 : vector<10x32xf32>
    %388 = vector.broadcast %218 : vector<1x32xf32> to vector<10x32xf32>
    %389 = arith.mulf %387, %388 : vector<10x32xf32>
    %390 = vector.broadcast %219 : vector<1x32xf32> to vector<10x32xf32>
    %391 = arith.addf %389, %390 : vector<10x32xf32>
    %c0_156 = arith.constant 0 : index
    %c0_157 = arith.constant 0 : index
    %c0_158 = arith.constant 0 : index
    %392 = vector.load %arg6[%c0_156, %c0_157, %c0_158] : memref<1x10x32xf32, #tpu.memory_space<vmem>>, vector<1x10x32xf32>
    %393 = vector.shape_cast %392 : vector<1x10x32xf32> to vector<10x32xf32>
    %394 = vector.shape_cast %391 : vector<10x32xf32> to vector<1x10x32xf32>
    tpu.vector_store %arg6[%c0_156, %c0_157, %c0_158], %394 {strides = array<i32>} : memref<1x10x32xf32, #tpu.memory_space<vmem>>, vector<1x10x32xf32>,
    %395 = vector.extract_strided_slice %391 {offsets = [9, 0], sizes = [1, 32], strides = [1, 1]} : vector<10x32xf32> to vector<1x32xf32>
    %c20 = arith.constant 20 : index
    %c0_159 = arith.constant 0 : index
    %396 = vector.load %arg5[%c20, %c0_159] : memref<21x128xf32, #tpu.memory_space<vmem>>, vector<1x32xf32>
    %c20_160 = arith.constant 20 : index
    %c32_161 = arith.constant 32 : index
    %397 = vector.load %arg5[%c20_160, %c32_161] : memref<21x128xf32, #tpu.memory_space<vmem>>, vector<1x32xf32>
    %398 = arith.mulf %395, %396 : vector<1x32xf32>
    %cst_162 = arith.constant dense<0.000000e+00> : vector<1xf32>
    %399 = vector.multi_reduction <add>, %398, %cst_162 [1] : vector<1x32xf32> to vector<1xf32>
    %400 = vector.shape_cast %399 : vector<1xf32> to vector<1x1xf32>
    %cst_163 = arith.constant dense<0.000000e+00> : vector<1xf32>
    %401 = vector.multi_reduction <add>, %397, %cst_163 [1] : vector<1x32xf32> to vector<1xf32>
    %402 = vector.shape_cast %401 : vector<1xf32> to vector<1x1xf32>
    %403 = arith.addf %400, %402 : vector<1x1xf32>
    %cst_164 = arith.constant 0.000000e+00 : f32
    %404 = vector.broadcast %cst_164 : f32 to vector<1x1xf32>
    %405 = arith.subf %404, %403 : vector<1x1xf32>
    %406 = math.exp %405 : vector<1x1xf32>
    %cst_165 = arith.constant 1.000000e+00 : f32
    %407 = vector.broadcast %cst_165 : f32 to vector<1x1xf32>
    %408 = arith.addf %407, %406 : vector<1x1xf32>
    %409 = tpu.reciprocal %408 {approx = true} : vector<1x1xf32> -> vector<1x1xf32>
    %410 = vector.shape_cast %409 : vector<1x1xf32> to vector<1x1xf32>
    %411 = vector.broadcast %410 : vector<1x1xf32> to vector<1x128xf32>
    %c0_166 = arith.constant 0 : index
    %c0_167 = arith.constant 0 : index
    %c0_168 = arith.constant 0 : index
    %412 = vector.load %arg7[%c0_166, %c0_167, %c0_168] : memref<1x1x128xf32, #tpu.memory_space<vmem>>, vector<1x1x128xf32>
    %413 = vector.shape_cast %412 : vector<1x1x128xf32> to vector<1x128xf32>
    %414 = vector.shape_cast %411 : vector<1x128xf32> to vector<1x1x128xf32>
    tpu.vector_store %arg7[%c0_166, %c0_167, %c0_168], %414 {strides = array<i32>} : memref<1x1x128xf32, #tpu.memory_space<vmem>>, vector<1x1x128xf32>,
    return
  }
  func.func @transform_0(%arg0: i32) -> (i32, i32, i32) {
    %c0_i32 = arith.constant 0 : i32
    %c0_i32_0 = arith.constant 0 : i32
    %c0_i32_1 = arith.constant 0 : i32
    return %arg0, %c0_i32, %c0_i32_0 : i32, i32, i32
  }
  func.func @transform_1(%arg0: i32) -> (i32, i32) {
    %c0_i32 = arith.constant 0 : i32
    %c0_i32_0 = arith.constant 0 : i32
    %c0_i32_1 = arith.constant 0 : i32
    return %c0_i32, %c0_i32_0 : i32, i32
  }
  func.func @transform_2(%arg0: i32) -> (i32, i32, i32) {
    %c0_i32 = arith.constant 0 : i32
    %c0_i32_0 = arith.constant 0 : i32
    %c0_i32_1 = arith.constant 0 : i32
    %c0_i32_2 = arith.constant 0 : i32
    return %c0_i32, %c0_i32_0, %c0_i32_1 : i32, i32, i32
  }
  func.func @transform_3(%arg0: i32) -> (i32, i32, i32) {
    %c0_i32 = arith.constant 0 : i32
    %c0_i32_0 = arith.constant 0 : i32
    %c0_i32_1 = arith.constant 0 : i32
    %c0_i32_2 = arith.constant 0 : i32
    return %c0_i32, %c0_i32_0, %c0_i32_1 : i32, i32, i32
  }
  func.func @transform_4(%arg0: i32) -> (i32, i32) {
    %c0_i32 = arith.constant 0 : i32
    %c0_i32_0 = arith.constant 0 : i32
    %c0_i32_1 = arith.constant 0 : i32
    return %c0_i32, %c0_i32_0 : i32, i32
  }
  func.func @transform_5(%arg0: i32) -> (i32, i32, i32) {
    %c0_i32 = arith.constant 0 : i32
    %c0_i32_0 = arith.constant 0 : i32
    %c0_i32_1 = arith.constant 0 : i32
    return %arg0, %c0_i32, %c0_i32_0 : i32, i32, i32
  }
  func.func @transform_6(%arg0: i32) -> (i32, i32, i32) {
    %c0_i32 = arith.constant 0 : i32
    %c0_i32_0 = arith.constant 0 : i32
    %c0_i32_1 = arith.constant 0 : i32
    return %arg0, %c0_i32, %c0_i32_0 : i32, i32, i32
  }
}

</mosaic_0001>

<llo_original>
// kernel: forward.1
$region0: #{forward.1}
  #allocation0 [shape = 'u32[]', space=smem, size = 0x4, offset = 0x4, fixed_abs, tag = 'smem constant byte address 0x4 - core index']
  #allocation1 [shape = 'u32[72,128]{1,0:T(1,128)}', space=vmem, size = 0x9000, scoped, tag = 'internal scratch']
  %s0 = inlined_call_operand.vmem [shape: f32[2,10,32], index: 0, kind: input, shape index: {}]
  %s1 = inlined_call_operand.vmem [shape: f32[10,32], index: 1, kind: input, shape index: {}]
  %s2 = inlined_call_operand.vmem [shape: f32[2,32,256], index: 2, kind: input, shape index: {}]
  %s3 = inlined_call_operand.vmem [shape: f32[2,128,32], index: 3, kind: input, shape index: {}]
  %s4 = inlined_call_operand.vmem [shape: f32[21,128], index: 4, kind: input, shape index: {}]
  %s5 = inlined_call_operand.vmem [shape: f32[2,10,32], index: 5, kind: output, shape index: {0}]
  %s6 = inlined_call_operand.vmem [shape: f32[2,1,128], index: 6, kind: output, shape index: {1}]
  %7 = xla_tuple %s5, %s6
  %s8 = sld [smem:[#allocation0]]
  $region61: #{forward.1} parent=0
    _
  %s10 = ssub.s32 1, %s8
  %s11 = scalar_select 0, %s10, %s8
  loop: start=0, step=1, limit=4
  $region2: #{forward.1} parent=0 // loop_pre_header
    _
  $region3: #{forward.1} parent=0 // loop_header
    %s13 = sphi 0, %s17
    %p14 = scmp.ge.s32.totalorder %s13, 4
    %s23 = sphi 0, %s25
    %s26 = sphi 0, %s23
    %s27 = sphi 0, %s26
    %s43 = sphi 0, %s27
    %s47 = sphi 0, %s47
    %s49 = sphi 0, %s47
    %s50 = sphi 0, %s49
    %s64 = sphi 0, %s50
    %s68 = sphi 0, %s68
    %s70 = sphi 0, %s68
    %s71 = sphi 0, %s70
    %s85 = sphi 0, %s71
    %s89 = sphi 0, %s89
    %s91 = sphi 0, %s89
    %s92 = sphi 0, %s91
    %s106 = sphi 0, %s92
    %s110 = sphi 0, %s110
    %s112 = sphi 0, %s110
    %s113 = sphi 0, %s112
    %s127 = sphi 0, %s113
    %s133 = sphi 0, %s135
    %s136 = sphi 0, %s133
    %s137 = sphi 0, %s136
    %s153 = sphi 0, %s137
    %s159 = sphi 0, %s161
    %s162 = sphi 0, %s159
    %s163 = sphi 0, %s162
    %s179 = sphi 0, %s163
  $region4: #{forward.1} parent=0 // loop_header_branch
    %16 = sbr.rel (%p14) target = $region8
  $region5: #{forward.1} parent=0 // loop_body
    %s18 = ssub.s32 %s13, 1
    %s19 = ssub.s32 %s13, 2
    %s20 = sadd.s32 %s13, 1
    %s21 = ssub.s32 %s13, %s20
    %p22 = scmp.eq.s32.totalorder %s21, 0
    %s24 = sadd.s32 %s23, 1
    %s25 = scalar_select %p22, %s23, %s24
    %p28 = pneg %p22
    %p29 = scmp.eq.s32.totalorder %s13, 1
    %p30 = por %p28, %p29
    %p31 = scmp.ne.s32.totalorder %s23, %s26
    %p32 = scmp.eq.s32.totalorder %s13, 0
    %p33 = por %p31, %p32
    %p34 = scmp.ne.s32.totalorder %s23, %s26
    %p35 = scmp.eq.s32.totalorder %s18, 1
    %p36 = por %p34, %p35
    %p37 = scmp.ne.s32.totalorder %s26, %s27
    %p38 = scmp.eq.s32.totalorder %s18, 0
    %p39 = por %p37, %p38
    %p40 = scmp.ne.s32.totalorder %s26, %s27
    %p41 = scmp.eq.s32.totalorder %s19, 1
    %p42 = por %p40, %p41
    %p44 = scmp.ne.s32.totalorder %s27, %s43
    %p45 = scmp.eq.s32.totalorder %s19, 0
    %p46 = por %p44, %p45
    %s48 = sadd.s32 %s47, 1
    %p51 = scmp.eq.s32.totalorder %s13, 1
    %p52 = scmp.ne.s32.totalorder %s47, %s49
    %p53 = scmp.eq.s32.totalorder %s13, 0
    %p54 = por %p52, %p53
    %p55 = scmp.ne.s32.totalorder %s47, %s49
    %p56 = scmp.eq.s32.totalorder %s18, 1
    %p57 = por %p55, %p56
    %p58 = scmp.ne.s32.totalorder %s49, %s50
    %p59 = scmp.eq.s32.totalorder %s18, 0
    %p60 = por %p58, %p59
    %p61 = scmp.ne.s32.totalorder %s49, %s50
    %p62 = scmp.eq.s32.totalorder %s19, 1
    %p63 = por %p61, %p62
    %p65 = scmp.ne.s32.totalorder %s50, %s64
    %p66 = scmp.eq.s32.totalorder %s19, 0
    %p67 = por %p65, %p66
    %s69 = sadd.s32 %s68, 1
    %p72 = scmp.eq.s32.totalorder %s13, 1
    %p73 = scmp.ne.s32.totalorder %s68, %s70
    %p74 = scmp.eq.s32.totalorder %s13, 0
    %p75 = por %p73, %p74
    %p76 = scmp.ne.s32.totalorder %s68, %s70
    %p77 = scmp.eq.s32.totalorder %s18, 1
    %p78 = por %p76, %p77
    %p79 = scmp.ne.s32.totalorder %s70, %s71
    %p80 = scmp.eq.s32.totalorder %s18, 0
    %p81 = por %p79, %p80
    %p82 = scmp.ne.s32.totalorder %s70, %s71
    %p83 = scmp.eq.s32.totalorder %s19, 1
    %p84 = por %p82, %p83
    %p86 = scmp.ne.s32.totalorder %s71, %s85
    %p87 = scmp.eq.s32.totalorder %s19, 0
    %p88 = por %p86, %p87
    %s90 = sadd.s32 %s89, 1
    %p93 = scmp.eq.s32.totalorder %s13, 1
    %p94 = scmp.ne.s32.totalorder %s89, %s91
    %p95 = scmp.eq.s32.totalorder %s13, 0
    %p96 = por %p94, %p95
    %p97 = scmp.ne.s32.totalorder %s89, %s91
    %p98 = scmp.eq.s32.totalorder %s18, 1
    %p99 = por %p97, %p98
    %p100 = scmp.ne.s32.totalorder %s91, %s92
    %p101 = scmp.eq.s32.totalorder %s18, 0
    %p102 = por %p100, %p101
    %p103 = scmp.ne.s32.totalorder %s91, %s92
    %p104 = scmp.eq.s32.totalorder %s19, 1
    %p105 = por %p103, %p104
    %p107 = scmp.ne.s32.totalorder %s92, %s106
    %p108 = scmp.eq.s32.totalorder %s19, 0
    %p109 = por %p107, %p108
    %s111 = sadd.s32 %s110, 1
    %p114 = scmp.eq.s32.totalorder %s13, 1
    %p115 = scmp.ne.s32.totalorder %s110, %s112
    %p116 = scmp.eq.s32.totalorder %s13, 0
    %p117 = por %p115, %p116
    %p118 = scmp.ne.s32.totalorder %s110, %s112
    %p119 = scmp.eq.s32.totalorder %s18, 1
    %p120 = por %p118, %p119
    %p121 = scmp.ne.s32.totalorder %s112, %s113
    %p122 = scmp.eq.s32.totalorder %s18, 0
    %p123 = por %p121, %p122
    %p124 = scmp.ne.s32.totalorder %s112, %s113
    %p125 = scmp.eq.s32.totalorder %s19, 1
    %p126 = por %p124, %p125
    %p128 = scmp.ne.s32.totalorder %s113, %s127
    %p129 = scmp.eq.s32.totalorder %s19, 0
    %p130 = por %p128, %p129
    %s131 = ssub.s32 %s13, %s20
    %p132 = scmp.eq.s32.totalorder %s131, 0
    %s134 = sadd.s32 %s133, 1
    %s135 = scalar_select %p132, %s133, %s134
    %p138 = pneg %p132
    %p139 = scmp.eq.s32.totalorder %s13, 1
    %p140 = por %p138, %p139
    %p141 = scmp.ne.s32.totalorder %s133, %s136
    %p142 = scmp.eq.s32.totalorder %s13, 0
    %p143 = por %p141, %p142
    %p144 = scmp.ne.s32.totalorder %s133, %s136
    %p145 = scmp.eq.s32.totalorder %s18, 1
    %p146 = por %p144, %p145
    %p147 = scmp.ne.s32.totalorder %s136, %s137
    %p148 = scmp.eq.s32.totalorder %s18, 0
    %p149 = por %p147, %p148
    %p150 = scmp.ne.s32.totalorder %s136, %s137
    %p151 = scmp.eq.s32.totalorder %s19, 1
    %p152 = por %p150, %p151
    %p154 = scmp.ne.s32.totalorder %s137, %s153
    %p155 = scmp.eq.s32.totalorder %s19, 0
    %p156 = por %p154, %p155
    %s157 = ssub.s32 %s13, %s20
    %p158 = scmp.eq.s32.totalorder %s157, 0
    %s160 = sadd.s32 %s159, 1
    %s161 = scalar_select %p158, %s159, %s160
    %p164 = pneg %p158
    %p165 = scmp.eq.s32.totalorder %s13, 1
    %p166 = por %p164, %p165
    %p167 = scmp.ne.s32.totalorder %s159, %s162
    %p168 = scmp.eq.s32.totalorder %s13, 0
    %p169 = por %p167, %p168
    %p170 = scmp.ne.s32.totalorder %s159, %s162
    %p171 = scmp.eq.s32.totalorder %s18, 1
    %p172 = por %p170, %p171
    %p173 = scmp.ne.s32.totalorder %s162, %s163
    %p174 = scmp.eq.s32.totalorder %s18, 0
    %p175 = por %p173, %p174
    %p176 = scmp.ne.s32.totalorder %s162, %s163
    %p177 = scmp.eq.s32.totalorder %s19, 1
    %p178 = por %p176, %p177
    %p180 = scmp.ne.s32.totalorder %s163, %s179
    %p181 = scmp.eq.s32.totalorder %s19, 0
    %p182 = por %p180, %p181
    %p183 = scmp.le.s32.totalorder 1, %s13
    %p184 = scmp.lt.s32.totalorder %s13, 3
    %p185 = pnand %p183, %p184
    %p186 = pneg %p185
    // Predicated region
    $region9: #{forward.1} parent=5 // pred_check
      _
    $region10: #{forward.1} parent=5 // pred_check_branch
      %188 = sbr.rel (%p185) target = $region12
    $region11: #{forward.1} parent=5 // pred_region
      %s189 = ssub.s32 %s13, 1
      // Predicated region
      $region13: #{forward.1} parent=11 // pred_check
        %p190 = pneg %p60
      $region14: #{forward.1} parent=11 // pred_check_branch
        %192 = sbr.rel (%p190) target = $region16
      $region15: #{forward.1} parent=11 // pred_region
        _
      $region16: #{forward.1} parent=11 // pred_fallthru
        _
      // Predicated region
      $region17: #{forward.1} parent=11 // pred_check
        %p193 = pneg %p81
      $region18: #{forward.1} parent=11 // pred_check_branch
        %195 = sbr.rel (%p193) target = $region20
      $region19: #{forward.1} parent=11 // pred_region
        _
      $region20: #{forward.1} parent=11 // pred_fallthru
        _
      // Predicated region
      $region21: #{forward.1} parent=11 // pred_check
        %p196 = pneg %p102
      $region22: #{forward.1} parent=11 // pred_check_branch
        %198 = sbr.rel (%p196) target = $region24
      $region23: #{forward.1} parent=11 // pred_region
        _
      $region24: #{forward.1} parent=11 // pred_fallthru
        _
      // Predicated region
      $region25: #{forward.1} parent=11 // pred_check
        %p199 = pneg %p123
      $region26: #{forward.1} parent=11 // pred_check_branch
        %201 = sbr.rel (%p199) target = $region28
      $region27: #{forward.1} parent=11 // pred_region
        _
      $region28: #{forward.1} parent=11 // pred_fallthru
        _
    $region12: #{forward.1} parent=5 // pred_fallthru
      _
    %p202 = scmp.lt.s32.totalorder %s13, 2
    // Predicated region
    $region29: #{forward.1} parent=5 // pred_check
      %p203 = pneg %p202
    $region30: #{forward.1} parent=5 // pred_check_branch
      %205 = sbr.rel (%p203) target = $region32
    $region31: #{forward.1} parent=5 // pred_region
      // Predicated region
      $region33: #{forward.1} parent=31 // pred_check
        %p206 = pneg %p33
      $region34: #{forward.1} parent=31 // pred_check_branch
        %208 = sbr.rel (%p206) target = $region36
      $region35: #{forward.1} parent=31 // pred_region
        %p209 = scmp.lt.s32.totalorder %s13, 1
        %s210 = scalar_select %p209, %s13, 1
        %s211 = smul.addr %s210, 2
        %s212 = smul.addr %s211, 8
        %s213 = scalar_lea.vmem %s0, %s212
      $region36: #{forward.1} parent=31 // pred_fallthru
        _
    $region32: #{forward.1} parent=5 // pred_fallthru
      _
    %p214 = scmp.le.s32.totalorder 1, %s13
    %p215 = scmp.lt.s32.totalorder %s13, 3
    %p216 = pnand %p214, %p215
    %p217 = pneg %p216
    // Predicated region
    $region37: #{forward.1} parent=5 // pred_check
      _
    $region38: #{forward.1} parent=5 // pred_check_branch
      %219 = sbr.rel (%p216) target = $region40
    $region39: #{forward.1} parent=5 // pred_region
      %s220 = ssub.s32 %s13, 1
      %p221 = scmp.lt.s32.totalorder %s18, 1
      %s222 = scalar_select %p221, %s18, 1
      %s223 = smul.addr %s222, 2
      %s224 = smul.addr %s223, 8
      %s225 = scalar_lea.vmem %s0, %s224
      %p226 = pneg %p39
      %p227 = pneg %p36
      %p228 = pneg %p60
      %p229 = pneg %p57
      %p230 = pneg %p81
      %p231 = pneg %p78
      %p232 = pneg %p102
      %p233 = pneg %p99
      %p234 = pneg %p123
      %p235 = pneg %p120
      %p236 = pneg %p149
      %p237 = pneg %p146
      %p238 = scmp.lt.s32.totalorder %s18, 1
      %s239 = scalar_select %p238, %s18, 1
      %s240 = smul.addr %s239, 2
      %s241 = smul.addr %s240, 8
      %s242 = scalar_lea.vmem %s5, %s241
      %p243 = pneg %p175
      %p244 = pneg %p172
      %p245 = scmp.lt.s32.totalorder %s18, 1
      %s246 = scalar_select %p245, %s18, 1
      %s247 = scalar_lea.vmem %s6, %s246
      %p248 = scmp.lt.s32.totalorder %s18, 1
      %s249 = scalar_select %p248, %s18, 1
      %s250 = smul.addr %s249, 2
      %s251 = smul.addr %s250, 8
      %s252 = scalar_lea.vmem %s0, %s251
      %p253 = scmp.lt.s32.totalorder %s18, 1
      %s254 = scalar_select %p253, %s18, 1
      %s255 = smul.addr %s254, 2
      %s256 = smul.addr %s255, 8
      %s257 = scalar_lea.vmem %s5, %s256
      %p258 = scmp.lt.s32.totalorder %s18, 1
      %s259 = scalar_select %p258, %s18, 1
      %s260 = scalar_lea.vmem %s6, %s259
      %v261 = vld [vmem:[%s252] sm:$0xff]
      %v262 = vld [vmem:[%s252 + $0x8] sm:$0x3]
      %v263 = vld [vmem:[%s1] sm:$0xff]
      %v264 = vld [vmem:[%s1 + $0x8] sm:$0x3]
      %v265 = vadd.f32 %v261, %v263
      %v266 = vadd.f32 %v262, %v264
      %v267 = vld [vmem:[%s2] sm:$0xff]
      %v268 = vld [vmem:[%s2 + $0x10] sm:$0xff]
      %v269 = vld [vmem:[%s2 + $0x20] sm:$0xff]
      %v270 = vld [vmem:[%s2 + $0x30] sm:$0xff]
      %v271 = vld [vmem:[%s2 + $0x8] sm:$0xff]
      %v272 = vld [vmem:[%s2 + $0x18] sm:$0xff]
      %v273 = vld [vmem:[%s2 + $0x28] sm:$0xff]
      %v274 = vld [vmem:[%s2 + $0x38] sm:$0xff]
      %v275 = vld [vmem:[%s3] sm:$0xff]
      %v276 = vld [vmem:[%s3 + $0x8] sm:$0xff]
      %v277 = vld [vmem:[%s3 + $0x10] sm:$0xff]
      %v278 = vld [vmem:[%s3 + $0x18] sm:$0xff]
      %v279 = vld [vmem:[%s3 + $0x20] sm:$0xff]
      %v280 = vld [vmem:[%s3 + $0x28] sm:$0xff]
      %v281 = vld [vmem:[%s3 + $0x30] sm:$0xff]
      %v282 = vld [vmem:[%s3 + $0x38] sm:$0xff]
      %v283 = vld [vmem:[%s3 + $0x40] sm:$0xff]
      %v284 = vld [vmem:[%s3 + $0x48] sm:$0xff]
      %v285 = vld [vmem:[%s3 + $0x50] sm:$0xff]
      %v286 = vld [vmem:[%s3 + $0x58] sm:$0xff]
      %v287 = vld [vmem:[%s3 + $0x60] sm:$0xff]
      %v288 = vld [vmem:[%s3 + $0x68] sm:$0xff]
      %v289 = vld [vmem:[%s3 + $0x70] sm:$0xff]
      %v290 = vld [vmem:[%s3 + $0x78] sm:$0xff]
      %v291 = vld [vmem:[%s4] sm:$0x1]
      %v292 = vld [vmem:[%s4 + $0x1] sm:$0x1]
      %v293 = vld [vmem:[%s4 + $0x2] sm:$0x1]
      %v294 = vld [vmem:[%s4 + $0x3] sm:$0x1]
      %v295 = vld [vmem:[%s4 + $0x4] sm:$0x1]
      %v296 = vld [vmem:[%s4 + $0x5] sm:$0x1]
      %v297 = vld [vmem:[%s4 + $0x6] sm:$0x1]
      %v298 = vld [vmem:[%s4 + $0x7] sm:$0x1]
      %v299 = vld [vmem:[%s4 + $0x8] sm:$0x1]
      %v300 = vld [vmem:[%s4 + $0x9] sm:$0x1]
      %v301 = vperm.slane %v291, 0
      %vm302 = vcmask 261120
      %v304 = vsel %vm302, %v265, 0
      %v307 = vsel %vm302, %v266, 0
      %309 = vmatpush.msra.mxu0 0.0
      %310 = vmatpush.msra.mxu0 0.0
      %311 = vmatpush.msra.mxu0 0.0
      %312 = vmatpush.msra.mxu0 0.0
      %313 = vmatpush.msra.mxu0 0.0
      %314 = vmatpush.msra.mxu0 0.0
      %315 = vmatpush.msra.mxu0 0.0
      %316 = vmatpush.msra.mxu0 0.0
      %317 = vmatpush.msra.mxu0 0.0
      %318 = vmatpush.msra.mxu0 0.0
      %319 = vmatpush.msra.mxu0 0.0
      %320 = vmatpush.msra.mxu0 0.0
      %321 = vmatpush.msra.mxu0 %v270
      %322 = vmatpush.msra.mxu0 %v269
      %323 = vmatpush.msra.mxu0 %v268
      %324 = vmatpush.msra.mxu0 %v267
      %325 = vmatmul.f32.gmra.mxu0 %v304
      %v326 = vpop.f32.mrf.mxu0
      %v327 = vadd.f32 %v301, %v326
      %328 = vmatmul.f32.gmra.mxu0 %v307
      %v329 = vpop.f32.mrf.mxu0
      %v330 = vadd.f32 %v301, %v329
      %331 = vdwg.mxu0
      %v332 = vperm.slane %v292, 0
      %337 = vrot.lane.b32.xlu0 %v267, 96
      %v338 = vpop.permute.xlu0 %337
      %339 = vrot.lane.b32.xlu0 %v268, 96
      %v340 = vpop.permute.xlu0 %339
      %341 = vrot.lane.b32.xlu0 %v269, 96
      %v342 = vpop.permute.xlu0 %341
      %343 = vrot.lane.b32.xlu0 %v270, 96
      %v344 = vpop.permute.xlu0 %343
      %349 = vmatpush.msra.mxu0 0.0
      %350 = vmatpush.msra.mxu0 0.0
      %351 = vmatpush.msra.mxu0 0.0
      %352 = vmatpush.msra.mxu0 0.0
      %353 = vmatpush.msra.mxu0 0.0
      %354 = vmatpush.msra.mxu0 0.0
      %355 = vmatpush.msra.mxu0 0.0
      %356 = vmatpush.msra.mxu0 0.0
      %357 = vmatpush.msra.mxu0 0.0
      %358 = vmatpush.msra.mxu0 0.0
      %359 = vmatpush.msra.mxu0 0.0
      %360 = vmatpush.msra.mxu0 0.0
      %361 = vmatpush.msra.mxu0 %v344
      %362 = vmatpush.msra.mxu0 %v342
      %363 = vmatpush.msra.mxu0 %v340
      %364 = vmatpush.msra.mxu0 %v338
      %365 = vmatmul.f32.gmra.mxu0 %v304
      %v366 = vpop.f32.mrf.mxu0
      %v367 = vadd.f32 %v332, %v366
      %368 = vmatmul.f32.gmra.mxu0 %v307
      %v369 = vpop.f32.mrf.mxu0
      %v370 = vadd.f32 %v332, %v369
      %371 = vdwg.mxu0
      %v372 = vperm.slane %v293, 0
      %373 = vrot.lane.b32.xlu0 %v267, 64
      %v374 = vpop.permute.xlu0 %373
      %375 = vrot.lane.b32.xlu0 %v268, 64
      %v376 = vpop.permute.xlu0 %375
      %377 = vrot.lane.b32.xlu0 %v269, 64
      %v378 = vpop.permute.xlu0 %377
      %379 = vrot.lane.b32.xlu0 %v270, 64
      %v380 = vpop.permute.xlu0 %379
      %385 = vmatpush.msra.mxu0 0.0
      %386 = vmatpush.msra.mxu0 0.0
      %387 = vmatpush.msra.mxu0 0.0
      %388 = vmatpush.msra.mxu0 0.0
      %389 = vmatpush.msra.mxu0 0.0
      %390 = vmatpush.msra.mxu0 0.0
      %391 = vmatpush.msra.mxu0 0.0
      %392 = vmatpush.msra.mxu0 0.0
      %393 = vmatpush.msra.mxu0 0.0
      %394 = vmatpush.msra.mxu0 0.0
      %395 = vmatpush.msra.mxu0 0.0
      %396 = vmatpush.msra.mxu0 0.0
      %397 = vmatpush.msra.mxu0 %v380
      %398 = vmatpush.msra.mxu0 %v378
      %399 = vmatpush.msra.mxu0 %v376
      %400 = vmatpush.msra.mxu0 %v374
      %401 = vmatmul.f32.gmra.mxu0 %v304
      %v402 = vpop.f32.mrf.mxu0
      %v403 = vadd.f32 %v372, %v402
      %404 = vmatmul.f32.gmra.mxu0 %v307
      %v405 = vpop.f32.mrf.mxu0
      %v406 = vadd.f32 %v372, %v405
      %407 = vdwg.mxu0
      %vm408 = vcmask 64512
      %v410 = vsel %vm408, %v327, 0
      %v413 = vsel %vm408, %v330, 0
      %v416 = vsel %vm408, %v367, 0
      %v419 = vsel %vm408, %v370, 0
      %421 = vmatpush.xpose.msra.mxu0 0.0
      %422 = vmatpush.xpose.msra.mxu0 0.0
      %423 = vmatpush.xpose.msra.mxu0 0.0
      %424 = vmatpush.xpose.msra.mxu0 0.0
      %425 = vmatpush.xpose.msra.mxu0 0.0
      %426 = vmatpush.xpose.msra.mxu0 0.0
      %427 = vmatpush.xpose.msra.mxu0 0.0
      %428 = vmatpush.xpose.msra.mxu0 0.0
      %429 = vmatpush.xpose.msra.mxu0 0.0
      %430 = vmatpush.xpose.msra.mxu0 0.0
      %431 = vmatpush.xpose.msra.mxu0 0.0
      %432 = vmatpush.xpose.msra.mxu0 0.0
      %433 = vmatpush.xpose.msra.mxu0 0.0
      %434 = vmatpush.xpose.msra.mxu0 0.0
      %435 = vmatpush.xpose.msra.mxu0 %v419
      %436 = vmatpush.xpose.msra.mxu0 %v416
      %437 = vmatmul.f32.gmra.mxu0 %v410
      %v438 = vpop.f32.mrf.mxu0
      %v439 = vadd.f32 0.0, %v438
      %440 = vmatmul.f32.gmra.mxu0 %v413
      %v441 = vpop.f32.mrf.mxu0
      %v442 = vadd.f32 0.0, %v441
      %443 = vdwg.mxu0
      %v444 = vmul.f32 %v439, 0.35355338
      %v445 = vmul.f32 %v442, 0.35355338
      %vm446 = vcmask 80896
      %v447 = vsel %vm446, %v444, -inf
      %448 = vmax.xlane.f32.xlu0 %v447
      %v449 = vpop.xlane.xlu0 %448
      %vm450 = vcmask 74752
      %v451 = vsel %vm450, %v445, -inf
      %452 = vmax.xlane.f32.xlu0 %v451
      %v453 = vpop.xlane.xlu0 %452
      %v454 = vsub.f32 %v444, %v449
      %v455 = vsub.f32 %v445, %v453
      %v456 = vmul.f32 %v454, 1.442695
      %v457 = vpow.pop %v456
      %v458 = vmul.f32 %v455, 1.442695
      %v459 = vpow.pop %v458
      %v460 = vsel %vm446, %v457, 0.0
      %461 = vadd.xlane.f32.xlu0 %v460
      %v462 = vpop.xlane.xlu0 %461
      %v463 = vsel %vm450, %v459, 0.0
      %464 = vadd.xlane.f32.xlu0 %v463
      %v465 = vpop.xlane.xlu0 %464
      %v466 = vrcp.pop %v462
      %v467 = vrcp.pop %v465
      %v468 = vmul.f32 %v457, %v466
      %v469 = vmul.f32 %v459, %v467
      %v471 = vsel %vm446, %v468, 0
      %v474 = vsel %vm446, %v469, 0
      %vm476 = vcmask 1041408
      %v478 = vsel %vm476, %v406, 0
      %480 = vmatpush.msra.mxu0 0.0
      %481 = vmatpush.msra.mxu0 0.0
      %482 = vmatpush.msra.mxu0 0.0
      %483 = vmatpush.msra.mxu0 0.0
      %484 = vmatpush.msra.mxu0 0.0
      %485 = vmatpush.msra.mxu0 0.0
      %486 = vmatpush.msra.mxu0 0.0
      %487 = vmatpush.msra.mxu0 0.0
      %488 = vmatpush.msra.mxu0 0.0
      %489 = vmatpush.msra.mxu0 0.0
      %490 = vmatpush.msra.mxu0 0.0
      %491 = vmatpush.msra.mxu0 0.0
      %492 = vmatpush.msra.mxu0 0.0
      %493 = vmatpush.msra.mxu0 0.0
      %494 = vmatpush.msra.mxu0 %v478
      %495 = vmatpush.msra.mxu0 %v403
      %496 = vmatmul.f32.gmra.mxu0 %v471
      %v497 = vpop.f32.mrf.mxu0
      %v498 = vadd.f32 0.0, %v497
      %499 = vmatmul.f32.gmra.mxu0 %v474
      %v500 = vpop.f32.mrf.mxu0
      %v501 = vadd.f32 0.0, %v500
      %502 = vdwg.mxu0
      %503 = vrot.lane.b32.xlu0 %v327, 120
      %v504 = vpop.permute.xlu0 %503
      %505 = vrot.lane.b32.xlu0 %v330, 120
      %v506 = vpop.permute.xlu0 %505
      %507 = vrot.lane.b32.xlu0 %v367, 120
      %v508 = vpop.permute.xlu0 %507
      %509 = vrot.lane.b32.xlu0 %v370, 120
      %v510 = vpop.permute.xlu0 %509
      %v511 = vsel %vm408, %v504, 0
      %v513 = vsel %vm408, %v506, 0
      %v515 = vsel %vm408, %v508, 0
      %v517 = vsel %vm408, %v510, 0
      %519 = vmatpush.xpose.msra.mxu0 0.0
      %520 = vmatpush.xpose.msra.mxu0 0.0
      %521 = vmatpush.xpose.msra.mxu0 0.0
      %522 = vmatpush.xpose.msra.mxu0 0.0
      %523 = vmatpush.xpose.msra.mxu0 0.0
      %524 = vmatpush.xpose.msra.mxu0 0.0
      %525 = vmatpush.xpose.msra.mxu0 0.0
      %526 = vmatpush.xpose.msra.mxu0 0.0
      %527 = vmatpush.xpose.msra.mxu0 0.0
      %528 = vmatpush.xpose.msra.mxu0 0.0
      %529 = vmatpush.xpose.msra.mxu0 0.0
      %530 = vmatpush.xpose.msra.mxu0 0.0
      %531 = vmatpush.xpose.msra.mxu0 0.0
      %532 = vmatpush.xpose.msra.mxu0 0.0
      %533 = vmatpush.xpose.msra.mxu0 %v517
      %534 = vmatpush.xpose.msra.mxu0 %v515
      %535 = vmatmul.f32.gmra.mxu0 %v511
      %v536 = vpop.f32.mrf.mxu0
      %v537 = vadd.f32 0.0, %v536
      %538 = vmatmul.f32.gmra.mxu0 %v513
      %v539 = vpop.f32.mrf.mxu0
      %v540 = vadd.f32 0.0, %v539
      %541 = vdwg.mxu0
      %v542 = vmul.f32 %v537, 0.35355338
      %v543 = vmul.f32 %v540, 0.35355338
      %v544 = vsel %vm446, %v542, -inf
      %545 = vmax.xlane.f32.xlu0 %v544
      %v546 = vpop.xlane.xlu0 %545
      %v547 = vsel %vm450, %v543, -inf
      %548 = vmax.xlane.f32.xlu0 %v547
      %v549 = vpop.xlane.xlu0 %548
      %v550 = vsub.f32 %v542, %v546
      %v551 = vsub.f32 %v543, %v549
      %v552 = vmul.f32 %v550, 1.442695
      %v553 = vpow.pop %v552
      %v554 = vmul.f32 %v551, 1.442695
      %v555 = vpow.pop %v554
      %v556 = vsel %vm446, %v553, 0.0
      %557 = vadd.xlane.f32.xlu0 %v556
      %v558 = vpop.xlane.xlu0 %557
      %v559 = vsel %vm450, %v555, 0.0
      %560 = vadd.xlane.f32.xlu0 %v559
      %v561 = vpop.xlane.xlu0 %560
      %v562 = vrcp.pop %v558
      %v563 = vrcp.pop %v561
      %v564 = vmul.f32 %v553, %v562
      %v565 = vmul.f32 %v555, %v563
      %567 = vrot.lane.b32.xlu0 %v403, 120
      %v568 = vpop.permute.xlu0 %567
      %569 = vrot.lane.b32.xlu0 %v406, 120
      %v570 = vpop.permute.xlu0 %569
      %v573 = vsel %vm446, %v564, 0
      %v576 = vsel %vm446, %v565, 0
      %v578 = vsel %vm476, %v570, 0
      %580 = vmatpush.msra.mxu0 0.0
      %581 = vmatpush.msra.mxu0 0.0
      %582 = vmatpush.msra.mxu0 0.0
      %583 = vmatpush.msra.mxu0 0.0
      %584 = vmatpush.msra.mxu0 0.0
      %585 = vmatpush.msra.mxu0 0.0
      %586 = vmatpush.msra.mxu0 0.0
      %587 = vmatpush.msra.mxu0 0.0
      %588 = vmatpush.msra.mxu0 0.0
      %589 = vmatpush.msra.mxu0 0.0
      %590 = vmatpush.msra.mxu0 0.0
      %591 = vmatpush.msra.mxu0 0.0
      %592 = vmatpush.msra.mxu0 0.0
      %593 = vmatpush.msra.mxu0 0.0
      %594 = vmatpush.msra.mxu0 %v578
      %595 = vmatpush.msra.mxu0 %v568
      %596 = vmatmul.f32.gmra.mxu0 %v573
      %v597 = vpop.f32.mrf.mxu0
      %v598 = vadd.f32 0.0, %v597
      %599 = vmatmul.f32.gmra.mxu0 %v576
      %v600 = vpop.f32.mrf.mxu0
      %v601 = vadd.f32 0.0, %v600
      %602 = vdwg.mxu0
      %603 = vrot.lane.b32.xlu0 %v327, 112
      %v604 = vpop.permute.xlu0 %603
      %605 = vrot.lane.b32.xlu0 %v330, 112
      %v606 = vpop.permute.xlu0 %605
      %607 = vrot.lane.b32.xlu0 %v367, 112
      %v608 = vpop.permute.xlu0 %607
      %609 = vrot.lane.b32.xlu0 %v370, 112
      %v610 = vpop.permute.xlu0 %609
      %v611 = vsel %vm408, %v604, 0
      %v613 = vsel %vm408, %v606, 0
      %v615 = vsel %vm408, %v608, 0
      %v617 = vsel %vm408, %v610, 0
      %619 = vmatpush.xpose.msra.mxu0 0.0
      %620 = vmatpush.xpose.msra.mxu0 0.0
      %621 = vmatpush.xpose.msra.mxu0 0.0
      %622 = vmatpush.xpose.msra.mxu0 0.0
      %623 = vmatpush.xpose.msra.mxu0 0.0
      %624 = vmatpush.xpose.msra.mxu0 0.0
      %625 = vmatpush.xpose.msra.mxu0 0.0
      %626 = vmatpush.xpose.msra.mxu0 0.0
      %627 = vmatpush.xpose.msra.mxu0 0.0
      %628 = vmatpush.xpose.msra.mxu0 0.0
      %629 = vmatpush.xpose.msra.mxu0 0.0
      %630 = vmatpush.xpose.msra.mxu0 0.0
      %631 = vmatpush.xpose.msra.mxu0 0.0
      %632 = vmatpush.xpose.msra.mxu0 0.0
      %633 = vmatpush.xpose.msra.mxu0 %v617
      %634 = vmatpush.xpose.msra.mxu0 %v615
      %635 = vmatmul.f32.gmra.mxu0 %v611
      %v636 = vpop.f32.mrf.mxu0
      %v637 = vadd.f32 0.0, %v636
      %638 = vmatmul.f32.gmra.mxu0 %v613
      %v639 = vpop.f32.mrf.mxu0
      %v640 = vadd.f32 0.0, %v639
      %641 = vdwg.mxu0
      %v642 = vmul.f32 %v637, 0.35355338
      %v643 = vmul.f32 %v640, 0.35355338
      %v644 = vsel %vm446, %v642, -inf
      %645 = vmax.xlane.f32.xlu0 %v644
      %v646 = vpop.xlane.xlu0 %645
      %v647 = vsel %vm450, %v643, -inf
      %648 = vmax.xlane.f32.xlu0 %v647
      %v649 = vpop.xlane.xlu0 %648
      %v650 = vsub.f32 %v642, %v646
      %v651 = vsub.f32 %v643, %v649
      %v652 = vmul.f32 %v650, 1.442695
      %v653 = vpow.pop %v652
      %v654 = vmul.f32 %v651, 1.442695
      %v655 = vpow.pop %v654
      %v656 = vsel %vm446, %v653, 0.0
      %657 = vadd.xlane.f32.xlu0 %v656
      %v658 = vpop.xlane.xlu0 %657
      %v659 = vsel %vm450, %v655, 0.0
      %660 = vadd.xlane.f32.xlu0 %v659
      %v661 = vpop.xlane.xlu0 %660
      %v662 = vrcp.pop %v658
      %v663 = vrcp.pop %v661
      %v664 = vmul.f32 %v653, %v662
      %v665 = vmul.f32 %v655, %v663
      %666 = vrot.lane.b32.xlu0 %v403, 112
      %v667 = vpop.permute.xlu0 %666
      %668 = vrot.lane.b32.xlu0 %v406, 112
      %v669 = vpop.permute.xlu0 %668
      %v672 = vsel %vm446, %v664, 0
      %v675 = vsel %vm446, %v665, 0
      %v677 = vsel %vm476, %v669, 0
      %679 = vmatpush.msra.mxu0 0.0
      %680 = vmatpush.msra.mxu0 0.0
      %681 = vmatpush.msra.mxu0 0.0
      %682 = vmatpush.msra.mxu0 0.0
      %683 = vmatpush.msra.mxu0 0.0
      %684 = vmatpush.msra.mxu0 0.0
      %685 = vmatpush.msra.mxu0 0.0
      %686 = vmatpush.msra.mxu0 0.0
      %687 = vmatpush.msra.mxu0 0.0
      %688 = vmatpush.msra.mxu0 0.0
      %689 = vmatpush.msra.mxu0 0.0
      %690 = vmatpush.msra.mxu0 0.0
      %691 = vmatpush.msra.mxu0 0.0
      %692 = vmatpush.msra.mxu0 0.0
      %693 = vmatpush.msra.mxu0 %v677
      %694 = vmatpush.msra.mxu0 %v667
      %695 = vmatmul.f32.gmra.mxu0 %v672
      %v696 = vpop.f32.mrf.mxu0
      %v697 = vadd.f32 0.0, %v696
      %698 = vmatmul.f32.gmra.mxu0 %v675
      %v699 = vpop.f32.mrf.mxu0
      %v700 = vadd.f32 0.0, %v699
      %701 = vdwg.mxu0
      %702 = vrot.lane.b32.xlu0 %v327, 104
      %v703 = vpop.permute.xlu0 %702
      %704 = vrot.lane.b32.xlu0 %v330, 104
      %v705 = vpop.permute.xlu0 %704
      %706 = vrot.lane.b32.xlu0 %v367, 104
      %v707 = vpop.permute.xlu0 %706
      %708 = vrot.lane.b32.xlu0 %v370, 104
      %v709 = vpop.permute.xlu0 %708
      %v710 = vsel %vm408, %v703, 0
      %v712 = vsel %vm408, %v705, 0
      %v714 = vsel %vm408, %v707, 0
      %v716 = vsel %vm408, %v709, 0
      %718 = vmatpush.xpose.msra.mxu0 0.0
      %719 = vmatpush.xpose.msra.mxu0 0.0
      %720 = vmatpush.xpose.msra.mxu0 0.0
      %721 = vmatpush.xpose.msra.mxu0 0.0
      %722 = vmatpush.xpose.msra.mxu0 0.0
      %723 = vmatpush.xpose.msra.mxu0 0.0
      %724 = vmatpush.xpose.msra.mxu0 0.0
      %725 = vmatpush.xpose.msra.mxu0 0.0
      %726 = vmatpush.xpose.msra.mxu0 0.0
      %727 = vmatpush.xpose.msra.mxu0 0.0
      %728 = vmatpush.xpose.msra.mxu0 0.0
      %729 = vmatpush.xpose.msra.mxu0 0.0
      %730 = vmatpush.xpose.msra.mxu0 0.0
      %731 = vmatpush.xpose.msra.mxu0 0.0
      %732 = vmatpush.xpose.msra.mxu0 %v716
      %733 = vmatpush.xpose.msra.mxu0 %v714
      %734 = vmatmul.f32.gmra.mxu0 %v710
      %v735 = vpop.f32.mrf.mxu0
      %v736 = vadd.f32 0.0, %v735
      %737 = vmatmul.f32.gmra.mxu0 %v712
      %v738 = vpop.f32.mrf.mxu0
      %v739 = vadd.f32 0.0, %v738
      %740 = vdwg.mxu0
      %v741 = vmul.f32 %v736, 0.35355338
      %v742 = vmul.f32 %v739, 0.35355338
      %v743 = vsel %vm446, %v741, -inf
      %744 = vmax.xlane.f32.xlu0 %v743
      %v745 = vpop.xlane.xlu0 %744
      %v746 = vsel %vm450, %v742, -inf
      %747 = vmax.xlane.f32.xlu0 %v746
      %v748 = vpop.xlane.xlu0 %747
      %v749 = vsub.f32 %v741, %v745
      %v750 = vsub.f32 %v742, %v748
      %v751 = vmul.f32 %v749, 1.442695
      %v752 = vpow.pop %v751
      %v753 = vmul.f32 %v750, 1.442695
      %v754 = vpow.pop %v753
      %v755 = vsel %vm446, %v752, 0.0
      %756 = vadd.xlane.f32.xlu0 %v755
      %v757 = vpop.xlane.xlu0 %756
      %v758 = vsel %vm450, %v754, 0.0
      %759 = vadd.xlane.f32.xlu0 %v758
      %v760 = vpop.xlane.xlu0 %759
      %v761 = vrcp.pop %v757
      %v762 = vrcp.pop %v760
      %v763 = vmul.f32 %v752, %v761
      %v764 = vmul.f32 %v754, %v762
      %765 = vrot.lane.b32.xlu0 %v403, 104
      %v766 = vpop.permute.xlu0 %765
      %767 = vrot.lane.b32.xlu0 %v406, 104
      %v768 = vpop.permute.xlu0 %767
      %v771 = vsel %vm446, %v763, 0
      %v774 = vsel %vm446, %v764, 0
      %v776 = vsel %vm476, %v768, 0
      %778 = vmatpush.msra.mxu0 0.0
      %779 = vmatpush.msra.mxu0 0.0
      %780 = vmatpush.msra.mxu0 0.0
      %781 = vmatpush.msra.mxu0 0.0
      %782 = vmatpush.msra.mxu0 0.0
      %783 = vmatpush.msra.mxu0 0.0
      %784 = vmatpush.msra.mxu0 0.0
      %785 = vmatpush.msra.mxu0 0.0
      %786 = vmatpush.msra.mxu0 0.0
      %787 = vmatpush.msra.mxu0 0.0
      %788 = vmatpush.msra.mxu0 0.0
      %789 = vmatpush.msra.mxu0 0.0
      %790 = vmatpush.msra.mxu0 0.0
      %791 = vmatpush.msra.mxu0 0.0
      %792 = vmatpush.msra.mxu0 %v776
      %793 = vmatpush.msra.mxu0 %v766
      %794 = vmatmul.f32.gmra.mxu0 %v771
      %v795 = vpop.f32.mrf.mxu0
      %v796 = vadd.f32 0.0, %v795
      %797 = vmatmul.f32.gmra.mxu0 %v774
      %v798 = vpop.f32.mrf.mxu0
      %v799 = vadd.f32 0.0, %v798
      %800 = vdwg.mxu0
      %803 = vrot.lane.b32.xlu0 %v598, 8
      %v804 = vpop.permute.xlu0 %803
      %805 = vrot.lane.b32.xlu0 %v601, 8
      %v806 = vpop.permute.xlu0 %805
      %811 = vrot.lane.b32.xlu0 %v697, 16
      %v812 = vpop.permute.xlu0 %811
      %813 = vrot.lane.b32.xlu0 %v700, 16
      %v814 = vpop.permute.xlu0 %813
      %819 = vrot.lane.b32.xlu0 %v796, 24
      %v820 = vpop.permute.xlu0 %819
      %821 = vrot.lane.b32.xlu0 %v799, 24
      %v822 = vpop.permute.xlu0 %821
      %v825 = vsel %vm408, %v498, %v804
      %v826 = vsel %vm408, %v501, %v806
      %vm827 = vcmask 130048
      %v828 = vsel %vm827, %v825, %v812
      %v829 = vsel %vm827, %v826, %v814
      %vm830 = vcmask 195584
      %v831 = vsel %vm830, %v828, %v820
      %v832 = vsel %vm830, %v829, %v822
      %v833 = vperm.slane %v294, 0
      %834 = vrot.lane.b32.xlu0 %v267, 32
      %v835 = vpop.permute.xlu0 %834
      %836 = vrot.lane.b32.xlu0 %v268, 32
      %v837 = vpop.permute.xlu0 %836
      %838 = vrot.lane.b32.xlu0 %v269, 32
      %v839 = vpop.permute.xlu0 %838
      %840 = vrot.lane.b32.xlu0 %v270, 32
      %v841 = vpop.permute.xlu0 %840
      %v847 = vsel %vm302, %v831, 0
      %v850 = vsel %vm302, %v832, 0
      %852 = vmatpush.msra.mxu0 0.0
      %853 = vmatpush.msra.mxu0 0.0
      %854 = vmatpush.msra.mxu0 0.0
      %855 = vmatpush.msra.mxu0 0.0
      %856 = vmatpush.msra.mxu0 0.0
      %857 = vmatpush.msra.mxu0 0.0
      %858 = vmatpush.msra.mxu0 0.0
      %859 = vmatpush.msra.mxu0 0.0
      %860 = vmatpush.msra.mxu0 0.0
      %861 = vmatpush.msra.mxu0 0.0
      %862 = vmatpush.msra.mxu0 0.0
      %863 = vmatpush.msra.mxu0 0.0
      %864 = vmatpush.msra.mxu0 %v841
      %865 = vmatpush.msra.mxu0 %v839
      %866 = vmatpush.msra.mxu0 %v837
      %867 = vmatpush.msra.mxu0 %v835
      %868 = vmatmul.f32.gmra.mxu0 %v847
      %v869 = vpop.f32.mrf.mxu0
      %v870 = vadd.f32 %v833, %v869
      %871 = vmatmul.f32.gmra.mxu0 %v850
      %v872 = vpop.f32.mrf.mxu0
      %v873 = vadd.f32 %v833, %v872
      %874 = vdwg.mxu0
      %v875 = vadd.f32 %v265, %v870
      %v876 = vadd.f32 %v266, %v873
      %v877 = vsel %vm302, %v875, 0.0
      %878 = vadd.xlane.f32.xlu0 %v877
      %v879 = vpop.xlane.xlu0 %878
      %vm880 = vcmask 254976
      %v881 = vsel %vm880, %v876, 0.0
      %882 = vadd.xlane.f32.xlu0 %v881
      %v883 = vpop.xlane.xlu0 %882
      %v884 = vrcp.pop 32.0
      %v885 = vmul.f32 32.0, %v884
      %v886 = vsub.f32 1.0, %v885
      %v887 = vmul.f32 %v884, %v886
      %v888 = vadd.f32 %v884, %v887
      %vm889 = vweird.f32 %v884
      %v890 = vsel %vm889, %v884, %v888
      %v891 = vmul.f32 %v879, %v890
      %v892 = vmul.f32 %v883, %v890
      %v893 = vsub.f32 %v875, %v891
      %v894 = vsub.f32 %v876, %v892
      %v895 = vmul.f32 %v893, %v893
      %v896 = vmul.f32 %v894, %v894
      %v897 = vsel %vm302, %v895, 0.0
      %898 = vadd.xlane.f32.xlu0 %v897
      %v899 = vpop.xlane.xlu0 %898
      %v900 = vsel %vm880, %v896, 0.0
      %901 = vadd.xlane.f32.xlu0 %v900
      %v902 = vpop.xlane.xlu0 %901
      %v903 = vmul.f32 %v899, %v890
      %v904 = vmul.f32 %v902, %v890
      %v905 = vadd.f32 %v903, 1e-05
      %v906 = vadd.f32 %v904, 1e-05
      %v907 = vrsqrt.pop %v905
      %v908 = vmul.f32 %v907, %v905
      %v909 = vmul.f32 %v908, %v907
      %v910 = vmul.f32 0.5, %v909
      %v911 = vsub.f32 1.5, %v910
      %v912 = vmul.f32 %v907, %v911
      %vm913 = vweird.f32 %v905
      %vm914 = vweird.f32 %v907
      %vm915 = vmor %vm913, %vm914
      %v916 = vsel %vm915, %v907, %v912
      %v917 = vrsqrt.pop %v906
      %v918 = vmul.f32 %v917, %v906
      %v919 = vmul.f32 %v918, %v917
      %v920 = vmul.f32 0.5, %v919
      %v921 = vsub.f32 1.5, %v920
      %v922 = vmul.f32 %v917, %v921
      %vm923 = vweird.f32 %v906
      %vm924 = vweird.f32 %v917
      %vm925 = vmor %vm923, %vm924
      %v926 = vsel %vm925, %v917, %v922
      %v927 = vmul.f32 %v893, %v916
      %v928 = vmul.f32 %v894, %v926
      %v929 = vperm.slane %v295, 0
      %v930 = vmul.f32 %v927, %v929
      %v931 = vmul.f32 %v928, %v929
      %v932 = vperm.slane %v296, 0
      %v933 = vadd.f32 %v930, %v932
      %v934 = vadd.f32 %v931, %v932
      %v935 = vperm.slane %v297, 0
      %v937 = vsel %vm302, %v933, 0
      %v940 = vsel %vm302, %v934, 0
      %942 = vmatpush.msra.mxu0 0.0
      %943 = vmatpush.msra.mxu0 0.0
      %944 = vmatpush.msra.mxu0 0.0
      %945 = vmatpush.msra.mxu0 0.0
      %946 = vmatpush.msra.mxu0 0.0
      %947 = vmatpush.msra.mxu0 0.0
      %948 = vmatpush.msra.mxu0 0.0
      %949 = vmatpush.msra.mxu0 0.0
      %950 = vmatpush.msra.mxu0 0.0
      %951 = vmatpush.msra.mxu0 0.0
      %952 = vmatpush.msra.mxu0 0.0
      %953 = vmatpush.msra.mxu0 0.0
      %954 = vmatpush.msra.mxu0 %v274
      %955 = vmatpush.msra.mxu0 %v273
      %956 = vmatpush.msra.mxu0 %v272
      %957 = vmatpush.msra.mxu0 %v271
      %958 = vmatmul.f32.gmra.mxu0 %v937
      %v959 = vpop.f32.mrf.mxu0
      %v960 = vadd.f32 %v935, %v959
      %961 = vmatmul.f32.gmra.mxu0 %v940
      %v962 = vpop.f32.mrf.mxu0
      %v963 = vadd.f32 %v935, %v962
      %964 = vdwg.mxu0
      %v965 = vmul.f32 %v960, 0.5
      %v966 = vmul.f32 %v963, 0.5
      %v967 = vmul.f32 %v960, 0.70710677
      %v968 = vmul.f32 %v963, 0.70710677
      %v969 = vand.u32 2147483647, %v967
      %v970 = vand.u32 2147483647, %v968
      %v971 = vmul.f32 %v969, 0.3275911
      %v972 = vmul.f32 %v970, 0.3275911
      %v973 = vadd.f32 %v971, 1.0
      %v974 = vadd.f32 %v972, 1.0
      %v975 = vrcp.pop %v973
      %v976 = vrcp.pop %v974
      %v977 = vmul.f32 %v975, 1.0614054
      %v978 = vmul.f32 %v976, 1.0614054
      %v979 = vadd.f32 %v977, -1.4531521
      %v980 = vadd.f32 %v978, -1.4531521
      %v981 = vmul.f32 %v979, %v975
      %v982 = vmul.f32 %v980, %v976
      %v983 = vadd.f32 %v981, 1.4214138
      %v984 = vadd.f32 %v982, 1.4214138
      %v985 = vmul.f32 %v983, %v975
      %v986 = vmul.f32 %v984, %v976
      %v987 = vadd.f32 %v985, -0.28449672
      %v988 = vadd.f32 %v986, -0.28449672
      %v989 = vmul.f32 %v987, %v975
      %v990 = vmul.f32 %v988, %v976
      %v991 = vadd.f32 %v989, 0.2548296
      %v992 = vadd.f32 %v990, 0.2548296
      %v993 = vmul.f32 %v991, %v975
      %v994 = vmul.f32 %v992, %v976
      %v995 = vsub.f32 0.0, %v969
      %v996 = vsub.f32 0.0, %v970
      %v997 = vmul.f32 %v995, %v969
      %v998 = vmul.f32 %v996, %v970
      %v999 = vmul.f32 %v997, 1.442695
      %v1000 = vpow.pop %v999
      %v1001 = vmul.f32 %v998, 1.442695
      %v1002 = vpow.pop %v1001
      %v1003 = vmul.f32 %v993, %v1000
      %v1004 = vmul.f32 %v994, %v1002
      %v1005 = vsub.f32 1.0, %v1003
      %v1006 = vsub.f32 1.0, %v1004
      %vm1007 = vcmp.ge.f32.partialorder %v967, 0.0
      %vm1008 = vcmp.ge.f32.partialorder %v968, 0.0
      %v1009 = vsub.f32 0.0, %v1005
      %v1010 = vsub.f32 0.0, %v1006
      %v1011 = vsel %vm1007, %v1005, %v1009
      %v1012 = vsel %vm1008, %v1006, %v1010
      %v1013 = vadd.f32 %v1011, 1.0
      %v1014 = vadd.f32 %v1012, 1.0
      %v1015 = vmul.f32 %v965, %v1013
      %v1016 = vmul.f32 %v966, %v1014
      %v1017 = vperm.slane %v298, 0
      %1018 = vmatpush.msra.mxu0 %v290
      %1019 = vmatpush.msra.mxu0 %v289
      %1020 = vmatpush.msra.mxu0 %v288
      %1021 = vmatpush.msra.mxu0 %v287
      %1022 = vmatpush.msra.mxu0 %v286
      %1023 = vmatpush.msra.mxu0 %v285
      %1024 = vmatpush.msra.mxu0 %v284
      %1025 = vmatpush.msra.mxu0 %v283
      %1026 = vmatpush.msra.mxu0 %v282
      %1027 = vmatpush.msra.mxu0 %v281
      %1028 = vmatpush.msra.mxu0 %v280
      %1029 = vmatpush.msra.mxu0 %v279
      %1030 = vmatpush.msra.mxu0 %v278
      %1031 = vmatpush.msra.mxu0 %v277
      %1032 = vmatpush.msra.mxu0 %v276
      %1033 = vmatpush.msra.mxu0 %v275
      %1034 = vmatmul.f32.gmra.mxu0 %v1015
      %v1035 = vpop.f32.mrf.mxu0
      %v1036 = vadd.f32 %v1017, %v1035
      %1037 = vmatmul.f32.gmra.mxu0 %v1016
      %v1038 = vpop.f32.mrf.mxu0
      %v1039 = vadd.f32 %v1017, %v1038
      %1040 = vdwg.mxu0
      %v1041 = vadd.f32 %v933, %v1036
      %v1042 = vadd.f32 %v934, %v1039
      %v1043 = vsel %vm302, %v1041, 0.0
      %1044 = vadd.xlane.f32.xlu0 %v1043
      %v1045 = vpop.xlane.xlu0 %1044
      %v1046 = vsel %vm880, %v1042, 0.0
      %1047 = vadd.xlane.f32.xlu0 %v1046
      %v1048 = vpop.xlane.xlu0 %1047
      %v1049 = vmul.f32 %v1045, %v890
      %v1050 = vmul.f32 %v1048, %v890
      %v1051 = vsub.f32 %v1041, %v1049
      %v1052 = vsub.f32 %v1042, %v1050
      %v1053 = vmul.f32 %v1051, %v1051
      %v1054 = vmul.f32 %v1052, %v1052
      %v1055 = vsel %vm302, %v1053, 0.0
      %1056 = vadd.xlane.f32.xlu0 %v1055
      %v1057 = vpop.xlane.xlu0 %1056
      %v1058 = vsel %vm880, %v1054, 0.0
      %1059 = vadd.xlane.f32.xlu0 %v1058
      %v1060 = vpop.xlane.xlu0 %1059
      %v1061 = vmul.f32 %v1057, %v890
      %v1062 = vmul.f32 %v1060, %v890
      %v1063 = vadd.f32 %v1061, 1e-05
      %v1064 = vadd.f32 %v1062, 1e-05
      %v1065 = vrsqrt.pop %v1063
      %v1066 = vmul.f32 %v1065, %v1063
      %v1067 = vmul.f32 %v1066, %v1065
      %v1068 = vmul.f32 0.5, %v1067
      %v1069 = vsub.f32 1.5, %v1068
      %v1070 = vmul.f32 %v1065, %v1069
      %vm1071 = vweird.f32 %v1063
      %vm1072 = vweird.f32 %v1065
      %vm1073 = vmor %vm1071, %vm1072
      %v1074 = vsel %vm1073, %v1065, %v1070
      %v1075 = vrsqrt.pop %v1064
      %v1076 = vmul.f32 %v1075, %v1064
      %v1077 = vmul.f32 %v1076, %v1075
      %v1078 = vmul.f32 0.5, %v1077
      %v1079 = vsub.f32 1.5, %v1078
      %v1080 = vmul.f32 %v1075, %v1079
      %vm1081 = vweird.f32 %v1064
      %vm1082 = vweird.f32 %v1075
      %vm1083 = vmor %vm1081, %vm1082
      %v1084 = vsel %vm1083, %v1075, %v1080
      %v1085 = vmul.f32 %v1051, %v1074
      %v1086 = vmul.f32 %v1052, %v1084
      %v1087 = vperm.slane %v299, 0
      %v1088 = vmul.f32 %v1085, %v1087
      %v1089 = vmul.f32 %v1086, %v1087
      %v1090 = vperm.slane %v300, 0
      %v1091 = vadd.f32 %v1088, %v1090
      %v1092 = vadd.f32 %v1089, %v1090
      %s1093 = scalar_lea.vmem %s2, 64
      %v1094 = vld [vmem:[%s1093] sm:$0xff]
      %v1095 = vld [vmem:[%s1093 + $0x10] sm:$0xff]
      %v1096 = vld [vmem:[%s1093 + $0x20] sm:$0xff]
      %v1097 = vld [vmem:[%s1093 + $0x30] sm:$0xff]
      %v1098 = vld [vmem:[%s1093 + $0x8] sm:$0xff]
      %v1099 = vld [vmem:[%s1093 + $0x18] sm:$0xff]
      %v1100 = vld [vmem:[%s1093 + $0x28] sm:$0xff]
      %v1101 = vld [vmem:[%s1093 + $0x38] sm:$0xff]
      %s1102 = scalar_lea.vmem %s3, 128
      %v1103 = vld [vmem:[%s1102] sm:$0xff]
      %v1104 = vld [vmem:[%s1102 + $0x8] sm:$0xff]
      %v1105 = vld [vmem:[%s1102 + $0x10] sm:$0xff]
      %v1106 = vld [vmem:[%s1102 + $0x18] sm:$0xff]
      %v1107 = vld [vmem:[%s1102 + $0x20] sm:$0xff]
      %v1108 = vld [vmem:[%s1102 + $0x28] sm:$0xff]
      %v1109 = vld [vmem:[%s1102 + $0x30] sm:$0xff]
      %v1110 = vld [vmem:[%s1102 + $0x38] sm:$0xff]
      %v1111 = vld [vmem:[%s1102 + $0x40] sm:$0xff]
      %v1112 = vld [vmem:[%s1102 + $0x48] sm:$0xff]
      %v1113 = vld [vmem:[%s1102 + $0x50] sm:$0xff]
      %v1114 = vld [vmem:[%s1102 + $0x58] sm:$0xff]
      %v1115 = vld [vmem:[%s1102 + $0x60] sm:$0xff]
      %v1116 = vld [vmem:[%s1102 + $0x68] sm:$0xff]
      %v1117 = vld [vmem:[%s1102 + $0x70] sm:$0xff]
      %v1118 = vld [vmem:[%s1102 + $0x78] sm:$0xff]
      %v1119 = vld [vmem:[%s4 + $0xa] sm:$0x1]
      %v1120 = vld [vmem:[%s4 + $0xb] sm:$0x1]
      %v1121 = vld [vmem:[%s4 + $0xc] sm:$0x1]
      %v1122 = vld [vmem:[%s4 + $0xd] sm:$0x1]
      %v1123 = vld [vmem:[%s4 + $0xe] sm:$0x1]
      %v1124 = vld [vmem:[%s4 + $0xf] sm:$0x1]
      %v1125 = vld [vmem:[%s4 + $0x10] sm:$0x1]
      %v1126 = vld [vmem:[%s4 + $0x11] sm:$0x1]
      %v1127 = vld [vmem:[%s4 + $0x12] sm:$0x1]
      %v1128 = vld [vmem:[%s4 + $0x13] sm:$0x1]
      %v1129 = vperm.slane %v1119, 0
      %v1131 = vsel %vm302, %v1091, 0
      %v1134 = vsel %vm302, %v1092, 0
      %1136 = vmatpush.msra.mxu0 0.0
      %1137 = vmatpush.msra.mxu0 0.0
      %1138 = vmatpush.msra.mxu0 0.0
      %1139 = vmatpush.msra.mxu0 0.0
      %1140 = vmatpush.msra.mxu0 0.0
      %1141 = vmatpush.msra.mxu0 0.0
      %1142 = vmatpush.msra.mxu0 0.0
      %1143 = vmatpush.msra.mxu0 0.0
      %1144 = vmatpush.msra.mxu0 0.0
      %1145 = vmatpush.msra.mxu0 0.0
      %1146 = vmatpush.msra.mxu0 0.0
      %1147 = vmatpush.msra.mxu0 0.0
      %1148 = vmatpush.msra.mxu0 %v1097
      %1149 = vmatpush.msra.mxu0 %v1096
      %1150 = vmatpush.msra.mxu0 %v1095
      %1151 = vmatpush.msra.mxu0 %v1094
      %1152 = vmatmul.f32.gmra.mxu0 %v1131
      %v1153 = vpop.f32.mrf.mxu0
      %v1154 = vadd.f32 %v1129, %v1153
      %1155 = vmatmul.f32.gmra.mxu0 %v1134
      %v1156 = vpop.f32.mrf.mxu0
      %v1157 = vadd.f32 %v1129, %v1156
      %1158 = vdwg.mxu0
      %v1159 = vperm.slane %v1120, 0
      %1164 = vrot.lane.b32.xlu0 %v1094, 96
      %v1165 = vpop.permute.xlu0 %1164
      %1166 = vrot.lane.b32.xlu0 %v1095, 96
      %v1167 = vpop.permute.xlu0 %1166
      %1168 = vrot.lane.b32.xlu0 %v1096, 96
      %v1169 = vpop.permute.xlu0 %1168
      %1170 = vrot.lane.b32.xlu0 %v1097, 96
      %v1171 = vpop.permute.xlu0 %1170
      %1176 = vmatpush.msra.mxu0 0.0
      %1177 = vmatpush.msra.mxu0 0.0
      %1178 = vmatpush.msra.mxu0 0.0
      %1179 = vmatpush.msra.mxu0 0.0
      %1180 = vmatpush.msra.mxu0 0.0
      %1181 = vmatpush.msra.mxu0 0.0
      %1182 = vmatpush.msra.mxu0 0.0
      %1183 = vmatpush.msra.mxu0 0.0
      %1184 = vmatpush.msra.mxu0 0.0
      %1185 = vmatpush.msra.mxu0 0.0
      %1186 = vmatpush.msra.mxu0 0.0
      %1187 = vmatpush.msra.mxu0 0.0
      %1188 = vmatpush.msra.mxu0 %v1171
      %1189 = vmatpush.msra.mxu0 %v1169
      %1190 = vmatpush.msra.mxu0 %v1167
      %1191 = vmatpush.msra.mxu0 %v1165
      %1192 = vmatmul.f32.gmra.mxu0 %v1131
      %v1193 = vpop.f32.mrf.mxu0
      %v1194 = vadd.f32 %v1159, %v1193
      %1195 = vmatmul.f32.gmra.mxu0 %v1134
      %v1196 = vpop.f32.mrf.mxu0
      %v1197 = vadd.f32 %v1159, %v1196
      %1198 = vdwg.mxu0
      %v1199 = vperm.slane %v1121, 0
      %1200 = vrot.lane.b32.xlu0 %v1094, 64
      %v1201 = vpop.permute.xlu0 %1200
      %1202 = vrot.lane.b32.xlu0 %v1095, 64
      %v1203 = vpop.permute.xlu0 %1202
      %1204 = vrot.lane.b32.xlu0 %v1096, 64
      %v1205 = vpop.permute.xlu0 %1204
      %1206 = vrot.lane.b32.xlu0 %v1097, 64
      %v1207 = vpop.permute.xlu0 %1206
      %1212 = vmatpush.msra.mxu0 0.0
      %1213 = vmatpush.msra.mxu0 0.0
      %1214 = vmatpush.msra.mxu0 0.0
      %1215 = vmatpush.msra.mxu0 0.0
      %1216 = vmatpush.msra.mxu0 0.0
      %1217 = vmatpush.msra.mxu0 0.0
      %1218 = vmatpush.msra.mxu0 0.0
      %1219 = vmatpush.msra.mxu0 0.0
      %1220 = vmatpush.msra.mxu0 0.0
      %1221 = vmatpush.msra.mxu0 0.0
      %1222 = vmatpush.msra.mxu0 0.0
      %1223 = vmatpush.msra.mxu0 0.0
      %1224 = vmatpush.msra.mxu0 %v1207
      %1225 = vmatpush.msra.mxu0 %v1205
      %1226 = vmatpush.msra.mxu0 %v1203
      %1227 = vmatpush.msra.mxu0 %v1201
      %1228 = vmatmul.f32.gmra.mxu0 %v1131
      %v1229 = vpop.f32.mrf.mxu0
      %v1230 = vadd.f32 %v1199, %v1229
      %1231 = vmatmul.f32.gmra.mxu0 %v1134
      %v1232 = vpop.f32.mrf.mxu0
      %v1233 = vadd.f32 %v1199, %v1232
      %1234 = vdwg.mxu0
      %v1236 = vsel %vm408, %v1154, 0
      %v1239 = vsel %vm408, %v1157, 0
      %v1242 = vsel %vm408, %v1194, 0
      %v1245 = vsel %vm408, %v1197, 0
      %1247 = vmatpush.xpose.msra.mxu0 0.0
      %1248 = vmatpush.xpose.msra.mxu0 0.0
      %1249 = vmatpush.xpose.msra.mxu0 0.0
      %1250 = vmatpush.xpose.msra.mxu0 0.0
      %1251 = vmatpush.xpose.msra.mxu0 0.0
      %1252 = vmatpush.xpose.msra.mxu0 0.0
      %1253 = vmatpush.xpose.msra.mxu0 0.0
      %1254 = vmatpush.xpose.msra.mxu0 0.0
      %1255 = vmatpush.xpose.msra.mxu0 0.0
      %1256 = vmatpush.xpose.msra.mxu0 0.0
      %1257 = vmatpush.xpose.msra.mxu0 0.0
      %1258 = vmatpush.xpose.msra.mxu0 0.0
      %1259 = vmatpush.xpose.msra.mxu0 0.0
      %1260 = vmatpush.xpose.msra.mxu0 0.0
      %1261 = vmatpush.xpose.msra.mxu0 %v1245
      %1262 = vmatpush.xpose.msra.mxu0 %v1242
      %1263 = vmatmul.f32.gmra.mxu0 %v1236
      %v1264 = vpop.f32.mrf.mxu0
      %v1265 = vadd.f32 0.0, %v1264
      %1266 = vmatmul.f32.gmra.mxu0 %v1239
      %v1267 = vpop.f32.mrf.mxu0
      %v1268 = vadd.f32 0.0, %v1267
      %1269 = vdwg.mxu0
      %v1270 = vmul.f32 %v1265, 0.35355338
      %v1271 = vmul.f32 %v1268, 0.35355338
      %v1272 = vsel %vm446, %v1270, -inf
      %1273 = vmax.xlane.f32.xlu0 %v1272
      %v1274 = vpop.xlane.xlu0 %1273
      %v1275 = vsel %vm450, %v1271, -inf
      %1276 = vmax.xlane.f32.xlu0 %v1275
      %v1277 = vpop.xlane.xlu0 %1276
      %v1278 = vsub.f32 %v1270, %v1274
      %v1279 = vsub.f32 %v1271, %v1277
      %v1280 = vmul.f32 %v1278, 1.442695
      %v1281 = vpow.pop %v1280
      %v1282 = vmul.f32 %v1279, 1.442695
      %v1283 = vpow.pop %v1282
      %v1284 = vsel %vm446, %v1281, 0.0
      %1285 = vadd.xlane.f32.xlu0 %v1284
      %v1286 = vpop.xlane.xlu0 %1285
      %v1287 = vsel %vm450, %v1283, 0.0
      %1288 = vadd.xlane.f32.xlu0 %v1287
      %v1289 = vpop.xlane.xlu0 %1288
      %v1290 = vrcp.pop %v1286
      %v1291 = vrcp.pop %v1289
      %v1292 = vmul.f32 %v1281, %v1290
      %v1293 = vmul.f32 %v1283, %v1291
      %v1295 = vsel %vm446, %v1292, 0
      %v1298 = vsel %vm446, %v1293, 0
      %v1301 = vsel %vm476, %v1233, 0
      %1303 = vmatpush.msra.mxu0 0.0
      %1304 = vmatpush.msra.mxu0 0.0
      %1305 = vmatpush.msra.mxu0 0.0
      %1306 = vmatpush.msra.mxu0 0.0
      %1307 = vmatpush.msra.mxu0 0.0
      %1308 = vmatpush.msra.mxu0 0.0
      %1309 = vmatpush.msra.mxu0 0.0
      %1310 = vmatpush.msra.mxu0 0.0
      %1311 = vmatpush.msra.mxu0 0.0
      %1312 = vmatpush.msra.mxu0 0.0
      %1313 = vmatpush.msra.mxu0 0.0
      %1314 = vmatpush.msra.mxu0 0.0
      %1315 = vmatpush.msra.mxu0 0.0
      %1316 = vmatpush.msra.mxu0 0.0
      %1317 = vmatpush.msra.mxu0 %v1301
      %1318 = vmatpush.msra.mxu0 %v1230
      %1319 = vmatmul.f32.gmra.mxu0 %v1295
      %v1320 = vpop.f32.mrf.mxu0
      %v1321 = vadd.f32 0.0, %v1320
      %1322 = vmatmul.f32.gmra.mxu0 %v1298
      %v1323 = vpop.f32.mrf.mxu0
      %v1324 = vadd.f32 0.0, %v1323
      %1325 = vdwg.mxu0
      %1326 = vrot.lane.b32.xlu0 %v1154, 120
      %v1327 = vpop.permute.xlu0 %1326
      %1328 = vrot.lane.b32.xlu0 %v1157, 120
      %v1329 = vpop.permute.xlu0 %1328
      %1330 = vrot.lane.b32.xlu0 %v1194, 120
      %v1331 = vpop.permute.xlu0 %1330
      %1332 = vrot.lane.b32.xlu0 %v1197, 120
      %v1333 = vpop.permute.xlu0 %1332
      %v1334 = vsel %vm408, %v1327, 0
      %v1336 = vsel %vm408, %v1329, 0
      %v1338 = vsel %vm408, %v1331, 0
      %v1340 = vsel %vm408, %v1333, 0
      %1342 = vmatpush.xpose.msra.mxu0 0.0
      %1343 = vmatpush.xpose.msra.mxu0 0.0
      %1344 = vmatpush.xpose.msra.mxu0 0.0
      %1345 = vmatpush.xpose.msra.mxu0 0.0
      %1346 = vmatpush.xpose.msra.mxu0 0.0
      %1347 = vmatpush.xpose.msra.mxu0 0.0
      %1348 = vmatpush.xpose.msra.mxu0 0.0
      %1349 = vmatpush.xpose.msra.mxu0 0.0
      %1350 = vmatpush.xpose.msra.mxu0 0.0
      %1351 = vmatpush.xpose.msra.mxu0 0.0
      %1352 = vmatpush.xpose.msra.mxu0 0.0
      %1353 = vmatpush.xpose.msra.mxu0 0.0
      %1354 = vmatpush.xpose.msra.mxu0 0.0
      %1355 = vmatpush.xpose.msra.mxu0 0.0
      %1356 = vmatpush.xpose.msra.mxu0 %v1340
      %1357 = vmatpush.xpose.msra.mxu0 %v1338
      %1358 = vmatmul.f32.gmra.mxu0 %v1334
      %v1359 = vpop.f32.mrf.mxu0
      %v1360 = vadd.f32 0.0, %v1359
      %1361 = vmatmul.f32.gmra.mxu0 %v1336
      %v1362 = vpop.f32.mrf.mxu0
      %v1363 = vadd.f32 0.0, %v1362
      %1364 = vdwg.mxu0
      %v1365 = vmul.f32 %v1360, 0.35355338
      %v1366 = vmul.f32 %v1363, 0.35355338
      %v1367 = vsel %vm446, %v1365, -inf
      %1368 = vmax.xlane.f32.xlu0 %v1367
      %v1369 = vpop.xlane.xlu0 %1368
      %v1370 = vsel %vm450, %v1366, -inf
      %1371 = vmax.xlane.f32.xlu0 %v1370
      %v1372 = vpop.xlane.xlu0 %1371
      %v1373 = vsub.f32 %v1365, %v1369
      %v1374 = vsub.f32 %v1366, %v1372
      %v1375 = vmul.f32 %v1373, 1.442695
      %v1376 = vpow.pop %v1375
      %v1377 = vmul.f32 %v1374, 1.442695
      %v1378 = vpow.pop %v1377
      %v1379 = vsel %vm446, %v1376, 0.0
      %1380 = vadd.xlane.f32.xlu0 %v1379
      %v1381 = vpop.xlane.xlu0 %1380
      %v1382 = vsel %vm450, %v1378, 0.0
      %1383 = vadd.xlane.f32.xlu0 %v1382
      %v1384 = vpop.xlane.xlu0 %1383
      %v1385 = vrcp.pop %v1381
      %v1386 = vrcp.pop %v1384
      %v1387 = vmul.f32 %v1376, %v1385
      %v1388 = vmul.f32 %v1378, %v1386
      %1390 = vrot.lane.b32.xlu0 %v1230, 120
      %v1391 = vpop.permute.xlu0 %1390
      %1392 = vrot.lane.b32.xlu0 %v1233, 120
      %v1393 = vpop.permute.xlu0 %1392
      %v1396 = vsel %vm446, %v1387, 0
      %v1399 = vsel %vm446, %v1388, 0
      %v1401 = vsel %vm476, %v1393, 0
      %1403 = vmatpush.msra.mxu0 0.0
      %1404 = vmatpush.msra.mxu0 0.0
      %1405 = vmatpush.msra.mxu0 0.0
      %1406 = vmatpush.msra.mxu0 0.0
      %1407 = vmatpush.msra.mxu0 0.0
      %1408 = vmatpush.msra.mxu0 0.0
      %1409 = vmatpush.msra.mxu0 0.0
      %1410 = vmatpush.msra.mxu0 0.0
      %1411 = vmatpush.msra.mxu0 0.0
      %1412 = vmatpush.msra.mxu0 0.0
      %1413 = vmatpush.msra.mxu0 0.0
      %1414 = vmatpush.msra.mxu0 0.0
      %1415 = vmatpush.msra.mxu0 0.0
      %1416 = vmatpush.msra.mxu0 0.0
      %1417 = vmatpush.msra.mxu0 %v1401
      %1418 = vmatpush.msra.mxu0 %v1391
      %1419 = vmatmul.f32.gmra.mxu0 %v1396
      %v1420 = vpop.f32.mrf.mxu0
      %v1421 = vadd.f32 0.0, %v1420
      %1422 = vmatmul.f32.gmra.mxu0 %v1399
      %v1423 = vpop.f32.mrf.mxu0
      %v1424 = vadd.f32 0.0, %v1423
      %1425 = vdwg.mxu0
      %1426 = vrot.lane.b32.xlu0 %v1154, 112
      %v1427 = vpop.permute.xlu0 %1426
      %1428 = vrot.lane.b32.xlu0 %v1157, 112
      %v1429 = vpop.permute.xlu0 %1428
      %1430 = vrot.lane.b32.xlu0 %v1194, 112
      %v1431 = vpop.permute.xlu0 %1430
      %1432 = vrot.lane.b32.xlu0 %v1197, 112
      %v1433 = vpop.permute.xlu0 %1432
      %v1434 = vsel %vm408, %v1427, 0
      %v1436 = vsel %vm408, %v1429, 0
      %v1438 = vsel %vm408, %v1431, 0
      %v1440 = vsel %vm408, %v1433, 0
      %1442 = vmatpush.xpose.msra.mxu0 0.0
      %1443 = vmatpush.xpose.msra.mxu0 0.0
      %1444 = vmatpush.xpose.msra.mxu0 0.0
      %1445 = vmatpush.xpose.msra.mxu0 0.0
      %1446 = vmatpush.xpose.msra.mxu0 0.0
      %1447 = vmatpush.xpose.msra.mxu0 0.0
      %1448 = vmatpush.xpose.msra.mxu0 0.0
      %1449 = vmatpush.xpose.msra.mxu0 0.0
      %1450 = vmatpush.xpose.msra.mxu0 0.0
      %1451 = vmatpush.xpose.msra.mxu0 0.0
      %1452 = vmatpush.xpose.msra.mxu0 0.0
      %1453 = vmatpush.xpose.msra.mxu0 0.0
      %1454 = vmatpush.xpose.msra.mxu0 0.0
      %1455 = vmatpush.xpose.msra.mxu0 0.0
      %1456 = vmatpush.xpose.msra.mxu0 %v1440
      %1457 = vmatpush.xpose.msra.mxu0 %v1438
      %1458 = vmatmul.f32.gmra.mxu0 %v1434
      %v1459 = vpop.f32.mrf.mxu0
      %v1460 = vadd.f32 0.0, %v1459
      %1461 = vmatmul.f32.gmra.mxu0 %v1436
      %v1462 = vpop.f32.mrf.mxu0
      %v1463 = vadd.f32 0.0, %v1462
      %1464 = vdwg.mxu0
      %v1465 = vmul.f32 %v1460, 0.35355338
      %v1466 = vmul.f32 %v1463, 0.35355338
      %v1467 = vsel %vm446, %v1465, -inf
      %1468 = vmax.xlane.f32.xlu0 %v1467
      %v1469 = vpop.xlane.xlu0 %1468
      %v1470 = vsel %vm450, %v1466, -inf
      %1471 = vmax.xlane.f32.xlu0 %v1470
      %v1472 = vpop.xlane.xlu0 %1471
      %v1473 = vsub.f32 %v1465, %v1469
      %v1474 = vsub.f32 %v1466, %v1472
      %v1475 = vmul.f32 %v1473, 1.442695
      %v1476 = vpow.pop %v1475
      %v1477 = vmul.f32 %v1474, 1.442695
      %v1478 = vpow.pop %v1477
      %v1479 = vsel %vm446, %v1476, 0.0
      %1480 = vadd.xlane.f32.xlu0 %v1479
      %v1481 = vpop.xlane.xlu0 %1480
      %v1482 = vsel %vm450, %v1478, 0.0
      %1483 = vadd.xlane.f32.xlu0 %v1482
      %v1484 = vpop.xlane.xlu0 %1483
      %v1485 = vrcp.pop %v1481
      %v1486 = vrcp.pop %v1484
      %v1487 = vmul.f32 %v1476, %v1485
      %v1488 = vmul.f32 %v1478, %v1486
      %1489 = vrot.lane.b32.xlu0 %v1230, 112
      %v1490 = vpop.permute.xlu0 %1489
      %1491 = vrot.lane.b32.xlu0 %v1233, 112
      %v1492 = vpop.permute.xlu0 %1491
      %v1495 = vsel %vm446, %v1487, 0
      %v1498 = vsel %vm446, %v1488, 0
      %v1500 = vsel %vm476, %v1492, 0
      %1502 = vmatpush.msra.mxu0 0.0
      %1503 = vmatpush.msra.mxu0 0.0
      %1504 = vmatpush.msra.mxu0 0.0
      %1505 = vmatpush.msra.mxu0 0.0
      %1506 = vmatpush.msra.mxu0 0.0
      %1507 = vmatpush.msra.mxu0 0.0
      %1508 = vmatpush.msra.mxu0 0.0
      %1509 = vmatpush.msra.mxu0 0.0
      %1510 = vmatpush.msra.mxu0 0.0
      %1511 = vmatpush.msra.mxu0 0.0
      %1512 = vmatpush.msra.mxu0 0.0
      %1513 = vmatpush.msra.mxu0 0.0
      %1514 = vmatpush.msra.mxu0 0.0
      %1515 = vmatpush.msra.mxu0 0.0
      %1516 = vmatpush.msra.mxu0 %v1500
      %1517 = vmatpush.msra.mxu0 %v1490
      %1518 = vmatmul.f32.gmra.mxu0 %v1495
      %v1519 = vpop.f32.mrf.mxu0
      %v1520 = vadd.f32 0.0, %v1519
      %1521 = vmatmul.f32.gmra.mxu0 %v1498
      %v1522 = vpop.f32.mrf.mxu0
      %v1523 = vadd.f32 0.0, %v1522
      %1524 = vdwg.mxu0
      %1525 = vrot.lane.b32.xlu0 %v1154, 104
      %v1526 = vpop.permute.xlu0 %1525
      %1527 = vrot.lane.b32.xlu0 %v1157, 104
      %v1528 = vpop.permute.xlu0 %1527
      %1529 = vrot.lane.b32.xlu0 %v1194, 104
      %v1530 = vpop.permute.xlu0 %1529
      %1531 = vrot.lane.b32.xlu0 %v1197, 104
      %v1532 = vpop.permute.xlu0 %1531
      %v1533 = vsel %vm408, %v1526, 0
      %v1535 = vsel %vm408, %v1528, 0
      %v1537 = vsel %vm408, %v1530, 0
      %v1539 = vsel %vm408, %v1532, 0
      %1541 = vmatpush.xpose.msra.mxu0 0.0
      %1542 = vmatpush.xpose.msra.mxu0 0.0
      %1543 = vmatpush.xpose.msra.mxu0 0.0
      %1544 = vmatpush.xpose.msra.mxu0 0.0
      %1545 = vmatpush.xpose.msra.mxu0 0.0
      %1546 = vmatpush.xpose.msra.mxu0 0.0
      %1547 = vmatpush.xpose.msra.mxu0 0.0
      %1548 = vmatpush.xpose.msra.mxu0 0.0
      %1549 = vmatpush.xpose.msra.mxu0 0.0
      %1550 = vmatpush.xpose.msra.mxu0 0.0
      %1551 = vmatpush.xpose.msra.mxu0 0.0
      %1552 = vmatpush.xpose.msra.mxu0 0.0
      %1553 = vmatpush.xpose.msra.mxu0 0.0
      %1554 = vmatpush.xpose.msra.mxu0 0.0
      %1555 = vmatpush.xpose.msra.mxu0 %v1539
      %1556 = vmatpush.xpose.msra.mxu0 %v1537
      %1557 = vmatmul.f32.gmra.mxu0 %v1533
      %v1558 = vpop.f32.mrf.mxu0
      %v1559 = vadd.f32 0.0, %v1558
      %1560 = vmatmul.f32.gmra.mxu0 %v1535
      %v1561 = vpop.f32.mrf.mxu0
      %v1562 = vadd.f32 0.0, %v1561
      %1563 = vdwg.mxu0
      %v1564 = vmul.f32 %v1559, 0.35355338
      %v1565 = vmul.f32 %v1562, 0.35355338
      %v1566 = vsel %vm446, %v1564, -inf
      %1567 = vmax.xlane.f32.xlu0 %v1566
      %v1568 = vpop.xlane.xlu0 %1567
      %v1569 = vsel %vm450, %v1565, -inf
      %1570 = vmax.xlane.f32.xlu0 %v1569
      %v1571 = vpop.xlane.xlu0 %1570
      %v1572 = vsub.f32 %v1564, %v1568
      %v1573 = vsub.f32 %v1565, %v1571
      %v1574 = vmul.f32 %v1572, 1.442695
      %v1575 = vpow.pop %v1574
      %v1576 = vmul.f32 %v1573, 1.442695
      %v1577 = vpow.pop %v1576
      %v1578 = vsel %vm446, %v1575, 0.0
      %1579 = vadd.xlane.f32.xlu0 %v1578
      %v1580 = vpop.xlane.xlu0 %1579
      %v1581 = vsel %vm450, %v1577, 0.0
      %1582 = vadd.xlane.f32.xlu0 %v1581
      %v1583 = vpop.xlane.xlu0 %1582
      %v1584 = vrcp.pop %v1580
      %v1585 = vrcp.pop %v1583
      %v1586 = vmul.f32 %v1575, %v1584
      %v1587 = vmul.f32 %v1577, %v1585
      %1588 = vrot.lane.b32.xlu0 %v1230, 104
      %v1589 = vpop.permute.xlu0 %1588
      %1590 = vrot.lane.b32.xlu0 %v1233, 104
      %v1591 = vpop.permute.xlu0 %1590
      %v1594 = vsel %vm446, %v1586, 0
      %v1597 = vsel %vm446, %v1587, 0
      %v1599 = vsel %vm476, %v1591, 0
      %1601 = vmatpush.msra.mxu0 0.0
      %1602 = vmatpush.msra.mxu0 0.0
      %1603 = vmatpush.msra.mxu0 0.0
      %1604 = vmatpush.msra.mxu0 0.0
      %1605 = vmatpush.msra.mxu0 0.0
      %1606 = vmatpush.msra.mxu0 0.0
      %1607 = vmatpush.msra.mxu0 0.0
      %1608 = vmatpush.msra.mxu0 0.0
      %1609 = vmatpush.msra.mxu0 0.0
      %1610 = vmatpush.msra.mxu0 0.0
      %1611 = vmatpush.msra.mxu0 0.0
      %1612 = vmatpush.msra.mxu0 0.0
      %1613 = vmatpush.msra.mxu0 0.0
      %1614 = vmatpush.msra.mxu0 0.0
      %1615 = vmatpush.msra.mxu0 %v1599
      %1616 = vmatpush.msra.mxu0 %v1589
      %1617 = vmatmul.f32.gmra.mxu0 %v1594
      %v1618 = vpop.f32.mrf.mxu0
      %v1619 = vadd.f32 0.0, %v1618
      %1620 = vmatmul.f32.gmra.mxu0 %v1597
      %v1621 = vpop.f32.mrf.mxu0
      %v1622 = vadd.f32 0.0, %v1621
      %1623 = vdwg.mxu0
      %1626 = vrot.lane.b32.xlu0 %v1421, 8
      %v1627 = vpop.permute.xlu0 %1626
      %1628 = vrot.lane.b32.xlu0 %v1424, 8
      %v1629 = vpop.permute.xlu0 %1628
      %1634 = vrot.lane.b32.xlu0 %v1520, 16
      %v1635 = vpop.permute.xlu0 %1634
      %1636 = vrot.lane.b32.xlu0 %v1523, 16
      %v1637 = vpop.permute.xlu0 %1636
      %1642 = vrot.lane.b32.xlu0 %v1619, 24
      %v1643 = vpop.permute.xlu0 %1642
      %1644 = vrot.lane.b32.xlu0 %v1622, 24
      %v1645 = vpop.permute.xlu0 %1644
      %v1648 = vsel %vm408, %v1321, %v1627
      %v1649 = vsel %vm408, %v1324, %v1629
      %v1650 = vsel %vm827, %v1648, %v1635
      %v1651 = vsel %vm827, %v1649, %v1637
      %v1652 = vsel %vm830, %v1650, %v1643
      %v1653 = vsel %vm830, %v1651, %v1645
      %v1654 = vperm.slane %v1122, 0
      %1655 = vrot.lane.b32.xlu0 %v1094, 32
      %v1656 = vpop.permute.xlu0 %1655
      %1657 = vrot.lane.b32.xlu0 %v1095, 32
      %v1658 = vpop.permute.xlu0 %1657
      %1659 = vrot.lane.b32.xlu0 %v1096, 32
      %v1660 = vpop.permute.xlu0 %1659
      %1661 = vrot.lane.b32.xlu0 %v1097, 32
      %v1662 = vpop.permute.xlu0 %1661
      %v1668 = vsel %vm302, %v1652, 0
      %v1671 = vsel %vm302, %v1653, 0
      %1673 = vmatpush.msra.mxu0 0.0
      %1674 = vmatpush.msra.mxu0 0.0
      %1675 = vmatpush.msra.mxu0 0.0
      %1676 = vmatpush.msra.mxu0 0.0
      %1677 = vmatpush.msra.mxu0 0.0
      %1678 = vmatpush.msra.mxu0 0.0
      %1679 = vmatpush.msra.mxu0 0.0
      %1680 = vmatpush.msra.mxu0 0.0
      %1681 = vmatpush.msra.mxu0 0.0
      %1682 = vmatpush.msra.mxu0 0.0
      %1683 = vmatpush.msra.mxu0 0.0
      %1684 = vmatpush.msra.mxu0 0.0
      %1685 = vmatpush.msra.mxu0 %v1662
      %1686 = vmatpush.msra.mxu0 %v1660
      %1687 = vmatpush.msra.mxu0 %v1658
      %1688 = vmatpush.msra.mxu0 %v1656
      %1689 = vmatmul.f32.gmra.mxu0 %v1668
      %v1690 = vpop.f32.mrf.mxu0
      %v1691 = vadd.f32 %v1654, %v1690
      %1692 = vmatmul.f32.gmra.mxu0 %v1671
      %v1693 = vpop.f32.mrf.mxu0
      %v1694 = vadd.f32 %v1654, %v1693
      %1695 = vdwg.mxu0
      %v1696 = vadd.f32 %v1091, %v1691
      %v1697 = vadd.f32 %v1092, %v1694
      %v1698 = vsel %vm302, %v1696, 0.0
      %1699 = vadd.xlane.f32.xlu0 %v1698
      %v1700 = vpop.xlane.xlu0 %1699
      %v1701 = vsel %vm880, %v1697, 0.0
      %1702 = vadd.xlane.f32.xlu0 %v1701
      %v1703 = vpop.xlane.xlu0 %1702
      %v1704 = vmul.f32 %v1700, %v890
      %v1705 = vmul.f32 %v1703, %v890
      %v1706 = vsub.f32 %v1696, %v1704
      %v1707 = vsub.f32 %v1697, %v1705
      %v1708 = vmul.f32 %v1706, %v1706
      %v1709 = vmul.f32 %v1707, %v1707
      %v1710 = vsel %vm302, %v1708, 0.0
      %1711 = vadd.xlane.f32.xlu0 %v1710
      %v1712 = vpop.xlane.xlu0 %1711
      %v1713 = vsel %vm880, %v1709, 0.0
      %1714 = vadd.xlane.f32.xlu0 %v1713
      %v1715 = vpop.xlane.xlu0 %1714
      %v1716 = vmul.f32 %v1712, %v890
      %v1717 = vmul.f32 %v1715, %v890
      %v1718 = vadd.f32 %v1716, 1e-05
      %v1719 = vadd.f32 %v1717, 1e-05
      %v1720 = vrsqrt.pop %v1718
      %v1721 = vmul.f32 %v1720, %v1718
      %v1722 = vmul.f32 %v1721, %v1720
      %v1723 = vmul.f32 0.5, %v1722
      %v1724 = vsub.f32 1.5, %v1723
      %v1725 = vmul.f32 %v1720, %v1724
      %vm1726 = vweird.f32 %v1718
      %vm1727 = vweird.f32 %v1720
      %vm1728 = vmor %vm1726, %vm1727
      %v1729 = vsel %vm1728, %v1720, %v1725
      %v1730 = vrsqrt.pop %v1719
      %v1731 = vmul.f32 %v1730, %v1719
      %v1732 = vmul.f32 %v1731, %v1730
      %v1733 = vmul.f32 0.5, %v1732
      %v1734 = vsub.f32 1.5, %v1733
      %v1735 = vmul.f32 %v1730, %v1734
      %vm1736 = vweird.f32 %v1719
      %vm1737 = vweird.f32 %v1730
      %vm1738 = vmor %vm1736, %vm1737
      %v1739 = vsel %vm1738, %v1730, %v1735
      %v1740 = vmul.f32 %v1706, %v1729
      %v1741 = vmul.f32 %v1707, %v1739
      %v1742 = vperm.slane %v1123, 0
      %v1743 = vmul.f32 %v1740, %v1742
      %v1744 = vmul.f32 %v1741, %v1742
      %v1745 = vperm.slane %v1124, 0
      %v1746 = vadd.f32 %v1743, %v1745
      %v1747 = vadd.f32 %v1744, %v1745
      %v1748 = vperm.slane %v1125, 0
      %v1750 = vsel %vm302, %v1746, 0
      %v1753 = vsel %vm302, %v1747, 0
      %1755 = vmatpush.msra.mxu0 0.0
      %1756 = vmatpush.msra.mxu0 0.0
      %1757 = vmatpush.msra.mxu0 0.0
      %1758 = vmatpush.msra.mxu0 0.0
      %1759 = vmatpush.msra.mxu0 0.0
      %1760 = vmatpush.msra.mxu0 0.0
      %1761 = vmatpush.msra.mxu0 0.0
      %1762 = vmatpush.msra.mxu0 0.0
      %1763 = vmatpush.msra.mxu0 0.0
      %1764 = vmatpush.msra.mxu0 0.0
      %1765 = vmatpush.msra.mxu0 0.0
      %1766 = vmatpush.msra.mxu0 0.0
      %1767 = vmatpush.msra.mxu0 %v1101
      %1768 = vmatpush.msra.mxu0 %v1100
      %1769 = vmatpush.msra.mxu0 %v1099
      %1770 = vmatpush.msra.mxu0 %v1098
      %1771 = vmatmul.f32.gmra.mxu0 %v1750
      %v1772 = vpop.f32.mrf.mxu0
      %v1773 = vadd.f32 %v1748, %v1772
      %1774 = vmatmul.f32.gmra.mxu0 %v1753
      %v1775 = vpop.f32.mrf.mxu0
      %v1776 = vadd.f32 %v1748, %v1775
      %1777 = vdwg.mxu0
      %v1778 = vmul.f32 %v1773, 0.5
      %v1779 = vmul.f32 %v1776, 0.5
      %v1780 = vmul.f32 %v1773, 0.70710677
      %v1781 = vmul.f32 %v1776, 0.70710677
      %v1782 = vand.u32 2147483647, %v1780
      %v1783 = vand.u32 2147483647, %v1781
      %v1784 = vmul.f32 %v1782, 0.3275911
      %v1785 = vmul.f32 %v1783, 0.3275911
      %v1786 = vadd.f32 %v1784, 1.0
      %v1787 = vadd.f32 %v1785, 1.0
      %v1788 = vrcp.pop %v1786
      %v1789 = vrcp.pop %v1787
      %v1790 = vmul.f32 %v1788, 1.0614054
      %v1791 = vmul.f32 %v1789, 1.0614054
      %v1792 = vadd.f32 %v1790, -1.4531521
      %v1793 = vadd.f32 %v1791, -1.4531521
      %v1794 = vmul.f32 %v1792, %v1788
      %v1795 = vmul.f32 %v1793, %v1789
      %v1796 = vadd.f32 %v1794, 1.4214138
      %v1797 = vadd.f32 %v1795, 1.4214138
      %v1798 = vmul.f32 %v1796, %v1788
      %v1799 = vmul.f32 %v1797, %v1789
      %v1800 = vadd.f32 %v1798, -0.28449672
      %v1801 = vadd.f32 %v1799, -0.28449672
      %v1802 = vmul.f32 %v1800, %v1788
      %v1803 = vmul.f32 %v1801, %v1789
      %v1804 = vadd.f32 %v1802, 0.2548296
      %v1805 = vadd.f32 %v1803, 0.2548296
      %v1806 = vmul.f32 %v1804, %v1788
      %v1807 = vmul.f32 %v1805, %v1789
      %v1808 = vsub.f32 0.0, %v1782
      %v1809 = vsub.f32 0.0, %v1783
      %v1810 = vmul.f32 %v1808, %v1782
      %v1811 = vmul.f32 %v1809, %v1783
      %v1812 = vmul.f32 %v1810, 1.442695
      %v1813 = vpow.pop %v1812
      %v1814 = vmul.f32 %v1811, 1.442695
      %v1815 = vpow.pop %v1814
      %v1816 = vmul.f32 %v1806, %v1813
      %v1817 = vmul.f32 %v1807, %v1815
      %v1818 = vsub.f32 1.0, %v1816
      %v1819 = vsub.f32 1.0, %v1817
      %vm1820 = vcmp.ge.f32.partialorder %v1780, 0.0
      %vm1821 = vcmp.ge.f32.partialorder %v1781, 0.0
      %v1822 = vsub.f32 0.0, %v1818
      %v1823 = vsub.f32 0.0, %v1819
      %v1824 = vsel %vm1820, %v1818, %v1822
      %v1825 = vsel %vm1821, %v1819, %v1823
      %v1826 = vadd.f32 %v1824, 1.0
      %v1827 = vadd.f32 %v1825, 1.0
      %v1828 = vmul.f32 %v1778, %v1826
      %v1829 = vmul.f32 %v1779, %v1827
      %v1830 = vperm.slane %v1126, 0
      %1831 = vmatpush.msra.mxu0 %v1118
      %1832 = vmatpush.msra.mxu0 %v1117
      %1833 = vmatpush.msra.mxu0 %v1116
      %1834 = vmatpush.msra.mxu0 %v1115
      %1835 = vmatpush.msra.mxu0 %v1114
      %1836 = vmatpush.msra.mxu0 %v1113
      %1837 = vmatpush.msra.mxu0 %v1112
      %1838 = vmatpush.msra.mxu0 %v1111
      %1839 = vmatpush.msra.mxu0 %v1110
      %1840 = vmatpush.msra.mxu0 %v1109
      %1841 = vmatpush.msra.mxu0 %v1108
      %1842 = vmatpush.msra.mxu0 %v1107
      %1843 = vmatpush.msra.mxu0 %v1106
      %1844 = vmatpush.msra.mxu0 %v1105
      %1845 = vmatpush.msra.mxu0 %v1104
      %1846 = vmatpush.msra.mxu0 %v1103
      %1847 = vmatmul.f32.gmra.mxu0 %v1828
      %v1848 = vpop.f32.mrf.mxu0
      %v1849 = vadd.f32 %v1830, %v1848
      %1850 = vmatmul.f32.gmra.mxu0 %v1829
      %v1851 = vpop.f32.mrf.mxu0
      %v1852 = vadd.f32 %v1830, %v1851
      %1853 = vdwg.mxu0
      %v1854 = vadd.f32 %v1746, %v1849
      %v1855 = vadd.f32 %v1747, %v1852
      %v1856 = vsel %vm302, %v1854, 0.0
      %1857 = vadd.xlane.f32.xlu0 %v1856
      %v1858 = vpop.xlane.xlu0 %1857
      %v1859 = vsel %vm880, %v1855, 0.0
      %1860 = vadd.xlane.f32.xlu0 %v1859
      %v1861 = vpop.xlane.xlu0 %1860
      %v1862 = vmul.f32 %v1858, %v890
      %v1863 = vmul.f32 %v1861, %v890
      %v1864 = vsub.f32 %v1854, %v1862
      %v1865 = vsub.f32 %v1855, %v1863
      %v1866 = vmul.f32 %v1864, %v1864
      %v1867 = vmul.f32 %v1865, %v1865
      %v1868 = vsel %vm302, %v1866, 0.0
      %1869 = vadd.xlane.f32.xlu0 %v1868
      %v1870 = vpop.xlane.xlu0 %1869
      %v1871 = vsel %vm880, %v1867, 0.0
      %1872 = vadd.xlane.f32.xlu0 %v1871
      %v1873 = vpop.xlane.xlu0 %1872
      %v1874 = vmul.f32 %v1870, %v890
      %v1875 = vmul.f32 %v1873, %v890
      %v1876 = vadd.f32 %v1874, 1e-05
      %v1877 = vadd.f32 %v1875, 1e-05
      %v1878 = vrsqrt.pop %v1876
      %v1879 = vmul.f32 %v1878, %v1876
      %v1880 = vmul.f32 %v1879, %v1878
      %v1881 = vmul.f32 0.5, %v1880
      %v1882 = vsub.f32 1.5, %v1881
      %v1883 = vmul.f32 %v1878, %v1882
      %vm1884 = vweird.f32 %v1876
      %vm1885 = vweird.f32 %v1878
      %vm1886 = vmor %vm1884, %vm1885
      %v1887 = vsel %vm1886, %v1878, %v1883
      %v1888 = vrsqrt.pop %v1877
      %v1889 = vmul.f32 %v1888, %v1877
      %v1890 = vmul.f32 %v1889, %v1888
      %v1891 = vmul.f32 0.5, %v1890
      %v1892 = vsub.f32 1.5, %v1891
      %v1893 = vmul.f32 %v1888, %v1892
      %vm1894 = vweird.f32 %v1877
      %vm1895 = vweird.f32 %v1888
      %vm1896 = vmor %vm1894, %vm1895
      %v1897 = vsel %vm1896, %v1888, %v1893
      %v1898 = vmul.f32 %v1864, %v1887
      %v1899 = vmul.f32 %v1865, %v1897
      %v1900 = vperm.slane %v1127, 0
      %v1901 = vmul.f32 %v1898, %v1900
      %v1902 = vmul.f32 %v1899, %v1900
      %v1903 = vperm.slane %v1128, 0
      %v1904 = vadd.f32 %v1901, %v1903
      %v1905 = vadd.f32 %v1902, %v1903
      %1906 = vst.msk [vmem:[%s257] sm:$0xff] %vm302, %v1904
      %1907 = vst.msk [vmem:[%s257 + $0x8] sm:$0x3] %vm880, %v1905
      %v1908 = vld [vmem:[%s4 + $0x14] sm:$0x1]
      %v1910 = vrot.slane %v1908, 7
      %v1912 = vmul.f32 %v1905, %v1910
      %vm1913 = vcmask 254977
      %v1914 = vsel %vm1913, %v1912, 0.0
      %1915 = vadd.xlane.f32.xlu0 %v1914
      %v1916 = vpop.xlane.xlu0 %1915
      %1917 = vrot.lane.b32.xlu0 %v1908, 96
      %v1918 = vpop.permute.xlu0 %1917
      %vm1920 = vcmask 253952
      %v1921 = vsel %vm1920, %v1918, 0.0
      %1922 = vadd.xlane.f32.xlu0 %v1921
      %v1923 = vpop.xlane.xlu0 %1922
      %v1925 = vrot.slane %v1923, 7
      %v1927 = vadd.f32 %v1916, %v1925
      %v1928 = vsub.f32 0.0, %v1927
      %v1929 = vmul.f32 %v1928, 1.442695
      %v1930 = vpow.pop %v1929
      %v1931 = vadd.f32 %v1930, 1.0
      %v1932 = vrcp.pop %v1931
      %1934 = vset.pattern.permute.xlu0 0
      %1935 = vperm.xlu0 %1934, %v1932
      %v1936 = vpop.permute.xlu0 %1935
      %1938 = vst [vmem:[%s260 - $0x1] sm:$0x2] %v1936
      %p1939 = scmp.lt.s32.totalorder %s18, 1
      %s1940 = scalar_select %p1939, %s18, 1
      %s1941 = smul.addr %s1940, 2
      %s1942 = smul.addr %s1941, 8
      %s1943 = scalar_lea.vmem %s5, %s1942
      %p1944 = scmp.lt.s32.totalorder %s18, 1
      %s1945 = scalar_select %p1944, %s18, 1
      %s1946 = scalar_lea.vmem %s6, %s1945
      // Predicated region
      $region41: #{forward.1} parent=39 // pred_check
        %p1947 = pneg %p146
      $region42: #{forward.1} parent=39 // pred_check_branch
        %1949 = sbr.rel (%p1947) target = $region44
      $region43: #{forward.1} parent=39 // pred_region
        _
      $region44: #{forward.1} parent=39 // pred_fallthru
        _
      // Predicated region
      $region45: #{forward.1} parent=39 // pred_check
        %p1950 = pneg %p172
      $region46: #{forward.1} parent=39 // pred_check_branch
        %1952 = sbr.rel (%p1950) target = $region48
      $region47: #{forward.1} parent=39 // pred_region
        _
      $region48: #{forward.1} parent=39 // pred_fallthru
        _
    $region40: #{forward.1} parent=5 // pred_fallthru
      _
    %p1953 = scmp.le.s32.totalorder 2, %s13
    // Predicated region
    $region49: #{forward.1} parent=5 // pred_check
      %p1954 = pneg %p1953
    $region50: #{forward.1} parent=5 // pred_check_branch
      %1956 = sbr.rel (%p1954) target = $region52
    $region51: #{forward.1} parent=5 // pred_region
      %s1957 = ssub.s32 %s13, 2
      // Predicated region
      $region53: #{forward.1} parent=51 // pred_check
        %p1958 = pneg %p152
      $region54: #{forward.1} parent=51 // pred_check_branch
        %1960 = sbr.rel (%p1958) target = $region56
      $region55: #{forward.1} parent=51 // pred_region
        %p1961 = scmp.lt.s32.totalorder %s19, 1
        %s1962 = scalar_select %p1961, %s19, 1
        %s1963 = smul.addr %s1962, 2
        %s1964 = smul.addr %s1963, 8
        %s1965 = scalar_lea.vmem %s5, %s1964
      $region56: #{forward.1} parent=51 // pred_fallthru
        _
      // Predicated region
      $region57: #{forward.1} parent=51 // pred_check
        %p1966 = pneg %p178
      $region58: #{forward.1} parent=51 // pred_check_branch
        %1968 = sbr.rel (%p1966) target = $region60
      $region59: #{forward.1} parent=51 // pred_region
        %p1969 = scmp.lt.s32.totalorder %s19, 1
        %s1970 = scalar_select %p1969, %s19, 1
        %s1971 = scalar_lea.vmem %s6, %s1970
      $region60: #{forward.1} parent=51 // pred_fallthru
        _
    $region52: #{forward.1} parent=5 // pred_fallthru
      _
  $region6: #{forward.1} parent=0 // loop_footer
    %s17 = sadd.s32 1, %s13
  $region7: #{forward.1} parent=0 // loop_footer_branch
    %12 = sbr.rel target = $region3
  $region8: #{forward.1} parent=0 // loop_exit
    _

</llo_original>
